<compile_context>
chip_gen: v5e
topology: v5e:2x2
jax: 0.10.0
libtpu: 0.0.40
codegen_flags: <defaults>
</compile_context>

<pallas_src>
import math

import jax
import jax.numpy as jnp
from jax.experimental import pallas as pl
from jax.experimental.pallas import tpu as pltpu

# ----------------------------- configuration --------------------------------
NUM_LAYERS = 2
HIDDEN = 32
NUM_HEADS = 4
HEAD_DIM = HIDDEN // NUM_HEADS
INTERMEDIATE = 64
LN_EPS = 1e-12
BATCH = 2
SEQ = 8
TOKENS = BATCH * SEQ

# packed per-layer vector-parameter slab: shape (8, VEC_W), one row per vector
VEC_W = 3 * HIDDEN  # 96 (widest row: fused QKV bias)
(ROW_BQKV, ROW_BI, ROW_BO, ROW_LN1G,
 ROW_LN1B, ROW_BO2, ROW_LN2G, ROW_LN2B) = range(8)


# ------------------------------- kernel --------------------------------------
def _layernorm(x, g, b):
    mu = jnp.mean(x, axis=-1, keepdims=True)
    d = x - mu
    var = jnp.mean(d * d, axis=-1, keepdims=True)
    return d * jax.lax.rsqrt(var + LN_EPS) * g + b


def _bert_kernel(x_ref, wqkv_ref, wo_ref, wi_ref, wo2_ref, vec_ref,
                 o_ref, ctx_ref):
    scale = 1.0 / math.sqrt(HEAD_DIM)
    inv_sqrt2 = 1.0 / math.sqrt(2.0)

    h = x_ref[...].astype(jnp.float32)                       # (TOKENS, HIDDEN)

    for l in range(NUM_LAYERS):                              # static unroll
        vec = vec_ref[l]                                     # (8, VEC_W)
        b_qkv = vec[ROW_BQKV:ROW_BQKV + 1, :3 * HIDDEN]      # (1, 96)
        b_i = vec[ROW_BI:ROW_BI + 1, :INTERMEDIATE]
        b_o = vec[ROW_BO:ROW_BO + 1, :HIDDEN]
        ln1_g = vec[ROW_LN1G:ROW_LN1G + 1, :HIDDEN]
        ln1_b = vec[ROW_LN1B:ROW_LN1B + 1, :HIDDEN]
        b_o2 = vec[ROW_BO2:ROW_BO2 + 1, :HIDDEN]
        ln2_g = vec[ROW_LN2G:ROW_LN2G + 1, :HIDDEN]
        ln2_b = vec[ROW_LN2B:ROW_LN2B + 1, :HIDDEN]

        # ---- fused Q/K/V projection: one MXU pass, 96-lane output -----------
        qkv = jnp.dot(h, wqkv_ref[l],
                      preferred_element_type=jnp.float32) + b_qkv   # (T, 3H)

        # ---- self-attention, per (batch, head), fully VMEM-resident ---------
        for b in range(BATCH):
            r0 = b * SEQ
            for hd in range(NUM_HEADS):
                c0 = hd * HEAD_DIM
                q_bh = qkv[r0:r0 + SEQ, c0:c0 + HEAD_DIM]
                k_bh = qkv[r0:r0 + SEQ,
                           HIDDEN + c0:HIDDEN + c0 + HEAD_DIM]
                v_bh = qkv[r0:r0 + SEQ,
                           2 * HIDDEN + c0:2 * HIDDEN + c0 + HEAD_DIM]
                # scores = q @ k^T (contract on head_dim), scaled
                s = jax.lax.dot_general(
                    q_bh, k_bh, (((1,), (1,)), ((), ())),
                    preferred_element_type=jnp.float32) * scale     # (S, S)
                m = jnp.max(s, axis=-1, keepdims=True)
                p = jnp.exp(s - m)
                p = p * pl.reciprocal(jnp.sum(p, axis=-1, keepdims=True),
                                      approx=True)
                ctx_ref[r0:r0 + SEQ, c0:c0 + HEAD_DIM] = jnp.dot(
                    p, v_bh, preferred_element_type=jnp.float32)

        # ---- BertSelfOutput: dense + residual + LayerNorm --------------------
        attn = jnp.dot(ctx_ref[...], wo_ref[l],
                       preferred_element_type=jnp.float32) + b_o
        h = _layernorm(attn + h, ln1_g, ln1_b)

        # ---- BertIntermediate (erf-GELU) + BertOutput (dense+res+LN) ---------
        inter = jnp.dot(h, wi_ref[l],
                        preferred_element_type=jnp.float32) + b_i
        inter = 0.5 * inter * (1.0 + jax.lax.erf(inter * inv_sqrt2))
        out = jnp.dot(inter, wo2_ref[l],
                      preferred_element_type=jnp.float32) + b_o2
        h = _layernorm(out + h, ln2_g, ln2_b)

    o_ref[...] = h.astype(o_ref.dtype)                       # single lane-dense store


# ------------------------------ model wrapper ---------------------------------
def bert_model(x, params):
    """x: (B, S, H) -> (S, H)  (matches `return x[0]` in the PyTorch module)."""
    B, S, H = x.shape
    x2 = x.reshape(B * S, H)

    out = pl.pallas_call(
        _bert_kernel,
        grid=(1,),
        in_specs=[
            pl.BlockSpec((B * S, H), lambda i: (0, 0)),
            pl.BlockSpec((NUM_LAYERS, H, 3 * H), lambda i: (0, 0, 0)),
            pl.BlockSpec((NUM_LAYERS, H, H), lambda i: (0, 0, 0)),
            pl.BlockSpec((NUM_LAYERS, H, INTERMEDIATE), lambda i: (0, 0, 0)),
            pl.BlockSpec((NUM_LAYERS, INTERMEDIATE, H), lambda i: (0, 0, 0)),
            pl.BlockSpec((NUM_LAYERS, 8, VEC_W), lambda i: (0, 0, 0)),
        ],
        out_specs=pl.BlockSpec((B * S, H), lambda i: (0, 0)),
        out_shape=jax.ShapeDtypeStruct((B * S, H), x.dtype),
        scratch_shapes=[pltpu.VMEM((B * S, H), jnp.float32)],   # attention context
        compiler_params=pltpu.CompilerParams(
            dimension_semantics=("arbitrary",)),
    )(x2, params["wqkv"], params["wo"], params["wi"], params["wo2"],
      params["vec"])

    return out.reshape(B, S, H)[0]


# --------------------------- parameter creation -------------------------------
def _pad_row(v):
    return jnp.pad(v, (0, VEC_W - v.shape[0]))


def init_params(key):
    s = 0.02
    layer_keys = jax.random.split(key, NUM_LAYERS)
    wqkv_l, wo_l, wi_l, wo2_l, vec_l = [], [], [], [], []
    for lk in layer_keys:
        ks = jax.random.split(lk, 12)
        wq = s * jax.random.normal(ks[0], (HIDDEN, HIDDEN), jnp.float32)
        bq = s * jax.random.normal(ks[1], (HIDDEN,), jnp.float32)
        wk = s * jax.random.normal(ks[2], (HIDDEN, HIDDEN), jnp.float32)
        bk = s * jax.random.normal(ks[3], (HIDDEN,), jnp.float32)
        wv = s * jax.random.normal(ks[4], (HIDDEN, HIDDEN), jnp.float32)
        bv = s * jax.random.normal(ks[5], (HIDDEN,), jnp.float32)
        wo = s * jax.random.normal(ks[6], (HIDDEN, HIDDEN), jnp.float32)
        bo = s * jax.random.normal(ks[7], (HIDDEN,), jnp.float32)
        wi = s * jax.random.normal(ks[8], (HIDDEN, INTERMEDIATE), jnp.float32)
        bi = s * jax.random.normal(ks[9], (INTERMEDIATE,), jnp.float32)
        wo2 = s * jax.random.normal(ks[10], (INTERMEDIATE, HIDDEN), jnp.float32)
        bo2 = s * jax.random.normal(ks[11], (HIDDEN,), jnp.float32)
        ln1_g = jnp.ones((HIDDEN,), jnp.float32)
        ln1_b = jnp.zeros((HIDDEN,), jnp.float32)
        ln2_g = jnp.ones((HIDDEN,), jnp.float32)
        ln2_b = jnp.zeros((HIDDEN,), jnp.float32)

        wqkv_l.append(jnp.concatenate([wq, wk, wv], axis=1))       # (H, 3H)
        wo_l.append(wo)
        wi_l.append(wi)
        wo2_l.append(wo2)
        vec_l.append(jnp.stack([
            jnp.concatenate([bq, bk, bv]),   # ROW_BQKV
            _pad_row(bi),                    # ROW_BI
            _pad_row(bo),                    # ROW_BO
            _pad_row(ln1_g),                 # ROW_LN1G
            _pad_row(ln1_b),                 # ROW_LN1B
            _pad_row(bo2),                   # ROW_BO2
            _pad_row(ln2_g),                 # ROW_LN2G
            _pad_row(ln2_b),                 # ROW_LN2B
        ]))

    return {
        "wqkv": jnp.stack(wqkv_l),   # (L, H, 3H)
        "wo":   jnp.stack(wo_l),     # (L, H, H)
        "wi":   jnp.stack(wi_l),     # (L, H, I)
        "wo2":  jnp.stack(wo2_l),    # (L, I, H)
        "vec":  jnp.stack(vec_l),    # (L, 8, VEC_W)
    }


# ----------------------------------- main --------------------------------------
if __name__ == "__main__":
    key = jax.random.PRNGKey(0)
    kx, kp = jax.random.split(key)

    x = jax.random.normal(kx, (BATCH, SEQ, HIDDEN), jnp.float32)
    params = init_params(kp)

    out = jax.jit(bert_model)(x, params)
    out = jax.block_until_ready(out)

    assert out.shape == (SEQ, HIDDEN), out.shape
    assert bool(jnp.all(jnp.isfinite(out)))
    print("KERNEL_OK")
</pallas_src>

<mosaic_0001>
module attributes {stable_mosaic.version = 11 : i64} {
  func.func @_bert_kernel(%arg0: i32, %arg1: memref<16x32xf32, #tpu.memory_space<vmem>>, %arg2: memref<2x32x96xf32, #tpu.memory_space<vmem>>, %arg3: memref<2x32x32xf32, #tpu.memory_space<vmem>>, %arg4: memref<2x32x64xf32, #tpu.memory_space<vmem>>, %arg5: memref<2x64x32xf32, #tpu.memory_space<vmem>>, %arg6: memref<2x8x96xf32, #tpu.memory_space<vmem>>, %arg7: memref<16x32xf32, #tpu.memory_space<vmem>>, %arg8: memref<16x32xf32, #tpu.memory_space<vmem>>) attributes {dimension_semantics = [#tpu.dimension_semantics<arbitrary>], iteration_bounds = array<i64: 1>, scalar_prefetch = 0 : i64, scratch_operands = 1 : i64, tpu.core_type = #tpu.core_type<tc>, window_params = [{pipeline_mode = #tpu.pipeline_mode<synchronous>, transform_indices = @transform_0, window_bounds = array<i64: 16, 32>}, {pipeline_mode = #tpu.pipeline_mode<synchronous>, transform_indices = @transform_1, window_bounds = array<i64: 2, 32, 96>}, {pipeline_mode = #tpu.pipeline_mode<synchronous>, transform_indices = @transform_2, window_bounds = array<i64: 2, 32, 32>}, {pipeline_mode = #tpu.pipeline_mode<synchronous>, transform_indices = @transform_3, window_bounds = array<i64: 2, 32, 64>}, {pipeline_mode = #tpu.pipeline_mode<synchronous>, transform_indices = @transform_4, window_bounds = array<i64: 2, 64, 32>}, {pipeline_mode = #tpu.pipeline_mode<synchronous>, transform_indices = @transform_5, window_bounds = array<i64: 2, 8, 96>}, {pipeline_mode = #tpu.pipeline_mode<synchronous>, transform_indices = @transform_6, window_bounds = array<i64: 16, 32>}]} {
    %c0 = arith.constant 0 : index
    %c0_0 = arith.constant 0 : index
    %0 = vector.load %arg1[%c0, %c0_0] : memref<16x32xf32, #tpu.memory_space<vmem>>, vector<16x32xf32>
    %c0_1 = arith.constant 0 : index
    %c0_2 = arith.constant 0 : index
    %c0_3 = arith.constant 0 : index
    %1 = vector.load %arg6[%c0_1, %c0_2, %c0_3] : memref<2x8x96xf32, #tpu.memory_space<vmem>>, vector<1x8x96xf32>
    %2 = vector.shape_cast %1 : vector<1x8x96xf32> to vector<8x96xf32>
    %3 = vector.extract_strided_slice %2 {offsets = [0, 0], sizes = [1, 96], strides = [1, 1]} : vector<8x96xf32> to vector<1x96xf32>
    %4 = vector.extract_strided_slice %2 {offsets = [1, 0], sizes = [1, 64], strides = [1, 1]} : vector<8x96xf32> to vector<1x64xf32>
    %5 = vector.extract_strided_slice %2 {offsets = [2, 0], sizes = [1, 32], strides = [1, 1]} : vector<8x96xf32> to vector<1x32xf32>
    %6 = vector.extract_strided_slice %2 {offsets = [3, 0], sizes = [1, 32], strides = [1, 1]} : vector<8x96xf32> to vector<1x32xf32>
    %7 = vector.extract_strided_slice %2 {offsets = [4, 0], sizes = [1, 32], strides = [1, 1]} : vector<8x96xf32> to vector<1x32xf32>
    %8 = vector.extract_strided_slice %2 {offsets = [5, 0], sizes = [1, 32], strides = [1, 1]} : vector<8x96xf32> to vector<1x32xf32>
    %9 = vector.extract_strided_slice %2 {offsets = [6, 0], sizes = [1, 32], strides = [1, 1]} : vector<8x96xf32> to vector<1x32xf32>
    %10 = vector.extract_strided_slice %2 {offsets = [7, 0], sizes = [1, 32], strides = [1, 1]} : vector<8x96xf32> to vector<1x32xf32>
    %c0_4 = arith.constant 0 : index
    %c0_5 = arith.constant 0 : index
    %c0_6 = arith.constant 0 : index
    %11 = vector.load %arg2[%c0_4, %c0_5, %c0_6] : memref<2x32x96xf32, #tpu.memory_space<vmem>>, vector<1x32x96xf32>
    %12 = vector.shape_cast %11 : vector<1x32x96xf32> to vector<32x96xf32>
    %cst = arith.constant dense<0.000000e+00> : vector<16x96xf32>
    %13 = tpu.matmul %0, %12, %cst {dimension_numbers = #tpu.dot_dimension_numbers<[1], [0], [0], [1], [0, 0, 1, 1], [], []>} : vector<16x32xf32>, vector<32x96xf32>, vector<16x96xf32> -> vector<16x96xf32>
    %14 = vector.broadcast %3 : vector<1x96xf32> to vector<16x96xf32>
    %15 = arith.addf %13, %14 : vector<16x96xf32>
    %16 = vector.extract_strided_slice %15 {offsets = [0, 0], sizes = [8, 8], strides = [1, 1]} : vector<16x96xf32> to vector<8x8xf32>
    %17 = vector.extract_strided_slice %15 {offsets = [0, 32], sizes = [8, 8], strides = [1, 1]} : vector<16x96xf32> to vector<8x8xf32>
    %18 = vector.extract_strided_slice %15 {offsets = [0, 64], sizes = [8, 8], strides = [1, 1]} : vector<16x96xf32> to vector<8x8xf32>
    %cst_7 = arith.constant dense<0.000000e+00> : vector<8x8xf32>
    %19 = tpu.matmul %16, %17, %cst_7 {dimension_numbers = #tpu.dot_dimension_numbers<[1], [1], [0], [0], [0, 0, 1, 0], [], []>} : vector<8x8xf32>, vector<8x8xf32>, vector<8x8xf32> -> vector<8x8xf32>
    %cst_8 = arith.constant 0.353553385 : f32
    %20 = vector.broadcast %cst_8 : f32 to vector<8x8xf32>
    %21 = arith.mulf %19, %20 : vector<8x8xf32>
    %cst_9 = arith.constant dense<0xFF800000> : vector<8xf32>
    %22 = vector.multi_reduction <maximumf>, %21, %cst_9 [1] : vector<8x8xf32> to vector<8xf32>
    %23 = vector.shape_cast %22 : vector<8xf32> to vector<8x1xf32>
    %24 = vector.broadcast %23 : vector<8x1xf32> to vector<8x8xf32>
    %25 = arith.subf %21, %24 : vector<8x8xf32>
    %26 = math.exp %25 : vector<8x8xf32>
    %cst_10 = arith.constant dense<0.000000e+00> : vector<8xf32>
    %27 = vector.multi_reduction <add>, %26, %cst_10 [1] : vector<8x8xf32> to vector<8xf32>
    %28 = vector.shape_cast %27 : vector<8xf32> to vector<8x1xf32>
    %29 = tpu.reciprocal %28 {approx = true} : vector<8x1xf32> -> vector<8x1xf32>
    %30 = vector.broadcast %29 : vector<8x1xf32> to vector<8x8xf32>
    %31 = arith.mulf %26, %30 : vector<8x8xf32>
    %cst_11 = arith.constant dense<0.000000e+00> : vector<8x8xf32>
    %32 = tpu.matmul %31, %18, %cst_11 {dimension_numbers = #tpu.dot_dimension_numbers<[1], [0], [0], [1], [0, 0, 1, 1], [], []>} : vector<8x8xf32>, vector<8x8xf32>, vector<8x8xf32> -> vector<8x8xf32>
    %c0_12 = arith.constant 0 : index
    %c0_13 = arith.constant 0 : index
    %33 = vector.load %arg8[%c0_12, %c0_13] : memref<16x32xf32, #tpu.memory_space<vmem>>, vector<8x8xf32>
    tpu.vector_store %arg8[%c0_12, %c0_13], %32 {strides = array<i32>} : memref<16x32xf32, #tpu.memory_space<vmem>>, vector<8x8xf32>,
    %34 = vector.extract_strided_slice %15 {offsets = [0, 8], sizes = [8, 8], strides = [1, 1]} : vector<16x96xf32> to vector<8x8xf32>
    %35 = vector.extract_strided_slice %15 {offsets = [0, 40], sizes = [8, 8], strides = [1, 1]} : vector<16x96xf32> to vector<8x8xf32>
    %36 = vector.extract_strided_slice %15 {offsets = [0, 72], sizes = [8, 8], strides = [1, 1]} : vector<16x96xf32> to vector<8x8xf32>
    %cst_14 = arith.constant dense<0.000000e+00> : vector<8x8xf32>
    %37 = tpu.matmul %34, %35, %cst_14 {dimension_numbers = #tpu.dot_dimension_numbers<[1], [1], [0], [0], [0, 0, 1, 0], [], []>} : vector<8x8xf32>, vector<8x8xf32>, vector<8x8xf32> -> vector<8x8xf32>
    %cst_15 = arith.constant 0.353553385 : f32
    %38 = vector.broadcast %cst_15 : f32 to vector<8x8xf32>
    %39 = arith.mulf %37, %38 : vector<8x8xf32>
    %cst_16 = arith.constant dense<0xFF800000> : vector<8xf32>
    %40 = vector.multi_reduction <maximumf>, %39, %cst_16 [1] : vector<8x8xf32> to vector<8xf32>
    %41 = vector.shape_cast %40 : vector<8xf32> to vector<8x1xf32>
    %42 = vector.broadcast %41 : vector<8x1xf32> to vector<8x8xf32>
    %43 = arith.subf %39, %42 : vector<8x8xf32>
    %44 = math.exp %43 : vector<8x8xf32>
    %cst_17 = arith.constant dense<0.000000e+00> : vector<8xf32>
    %45 = vector.multi_reduction <add>, %44, %cst_17 [1] : vector<8x8xf32> to vector<8xf32>
    %46 = vector.shape_cast %45 : vector<8xf32> to vector<8x1xf32>
    %47 = tpu.reciprocal %46 {approx = true} : vector<8x1xf32> -> vector<8x1xf32>
    %48 = vector.broadcast %47 : vector<8x1xf32> to vector<8x8xf32>
    %49 = arith.mulf %44, %48 : vector<8x8xf32>
    %cst_18 = arith.constant dense<0.000000e+00> : vector<8x8xf32>
    %50 = tpu.matmul %49, %36, %cst_18 {dimension_numbers = #tpu.dot_dimension_numbers<[1], [0], [0], [1], [0, 0, 1, 1], [], []>} : vector<8x8xf32>, vector<8x8xf32>, vector<8x8xf32> -> vector<8x8xf32>
    %c0_19 = arith.constant 0 : index
    %c8 = arith.constant 8 : index
    %51 = vector.load %arg8[%c0_19, %c8] : memref<16x32xf32, #tpu.memory_space<vmem>>, vector<8x8xf32>
    tpu.vector_store %arg8[%c0_19, %c8], %50 {strides = array<i32>} : memref<16x32xf32, #tpu.memory_space<vmem>>, vector<8x8xf32>,
    %52 = vector.extract_strided_slice %15 {offsets = [0, 16], sizes = [8, 8], strides = [1, 1]} : vector<16x96xf32> to vector<8x8xf32>
    %53 = vector.extract_strided_slice %15 {offsets = [0, 48], sizes = [8, 8], strides = [1, 1]} : vector<16x96xf32> to vector<8x8xf32>
    %54 = vector.extract_strided_slice %15 {offsets = [0, 80], sizes = [8, 8], strides = [1, 1]} : vector<16x96xf32> to vector<8x8xf32>
    %cst_20 = arith.constant dense<0.000000e+00> : vector<8x8xf32>
    %55 = tpu.matmul %52, %53, %cst_20 {dimension_numbers = #tpu.dot_dimension_numbers<[1], [1], [0], [0], [0, 0, 1, 0], [], []>} : vector<8x8xf32>, vector<8x8xf32>, vector<8x8xf32> -> vector<8x8xf32>
    %cst_21 = arith.constant 0.353553385 : f32
    %56 = vector.broadcast %cst_21 : f32 to vector<8x8xf32>
    %57 = arith.mulf %55, %56 : vector<8x8xf32>
    %cst_22 = arith.constant dense<0xFF800000> : vector<8xf32>
    %58 = vector.multi_reduction <maximumf>, %57, %cst_22 [1] : vector<8x8xf32> to vector<8xf32>
    %59 = vector.shape_cast %58 : vector<8xf32> to vector<8x1xf32>
    %60 = vector.broadcast %59 : vector<8x1xf32> to vector<8x8xf32>
    %61 = arith.subf %57, %60 : vector<8x8xf32>
    %62 = math.exp %61 : vector<8x8xf32>
    %cst_23 = arith.constant dense<0.000000e+00> : vector<8xf32>
    %63 = vector.multi_reduction <add>, %62, %cst_23 [1] : vector<8x8xf32> to vector<8xf32>
    %64 = vector.shape_cast %63 : vector<8xf32> to vector<8x1xf32>
    %65 = tpu.reciprocal %64 {approx = true} : vector<8x1xf32> -> vector<8x1xf32>
    %66 = vector.broadcast %65 : vector<8x1xf32> to vector<8x8xf32>
    %67 = arith.mulf %62, %66 : vector<8x8xf32>
    %cst_24 = arith.constant dense<0.000000e+00> : vector<8x8xf32>
    %68 = tpu.matmul %67, %54, %cst_24 {dimension_numbers = #tpu.dot_dimension_numbers<[1], [0], [0], [1], [0, 0, 1, 1], [], []>} : vector<8x8xf32>, vector<8x8xf32>, vector<8x8xf32> -> vector<8x8xf32>
    %c0_25 = arith.constant 0 : index
    %c16 = arith.constant 16 : index
    %69 = vector.load %arg8[%c0_25, %c16] : memref<16x32xf32, #tpu.memory_space<vmem>>, vector<8x8xf32>
    tpu.vector_store %arg8[%c0_25, %c16], %68 {strides = array<i32>} : memref<16x32xf32, #tpu.memory_space<vmem>>, vector<8x8xf32>,
    %70 = vector.extract_strided_slice %15 {offsets = [0, 24], sizes = [8, 8], strides = [1, 1]} : vector<16x96xf32> to vector<8x8xf32>
    %71 = vector.extract_strided_slice %15 {offsets = [0, 56], sizes = [8, 8], strides = [1, 1]} : vector<16x96xf32> to vector<8x8xf32>
    %72 = vector.extract_strided_slice %15 {offsets = [0, 88], sizes = [8, 8], strides = [1, 1]} : vector<16x96xf32> to vector<8x8xf32>
    %cst_26 = arith.constant dense<0.000000e+00> : vector<8x8xf32>
    %73 = tpu.matmul %70, %71, %cst_26 {dimension_numbers = #tpu.dot_dimension_numbers<[1], [1], [0], [0], [0, 0, 1, 0], [], []>} : vector<8x8xf32>, vector<8x8xf32>, vector<8x8xf32> -> vector<8x8xf32>
    %cst_27 = arith.constant 0.353553385 : f32
    %74 = vector.broadcast %cst_27 : f32 to vector<8x8xf32>
    %75 = arith.mulf %73, %74 : vector<8x8xf32>
    %cst_28 = arith.constant dense<0xFF800000> : vector<8xf32>
    %76 = vector.multi_reduction <maximumf>, %75, %cst_28 [1] : vector<8x8xf32> to vector<8xf32>
    %77 = vector.shape_cast %76 : vector<8xf32> to vector<8x1xf32>
    %78 = vector.broadcast %77 : vector<8x1xf32> to vector<8x8xf32>
    %79 = arith.subf %75, %78 : vector<8x8xf32>
    %80 = math.exp %79 : vector<8x8xf32>
    %cst_29 = arith.constant dense<0.000000e+00> : vector<8xf32>
    %81 = vector.multi_reduction <add>, %80, %cst_29 [1] : vector<8x8xf32> to vector<8xf32>
    %82 = vector.shape_cast %81 : vector<8xf32> to vector<8x1xf32>
    %83 = tpu.reciprocal %82 {approx = true} : vector<8x1xf32> -> vector<8x1xf32>
    %84 = vector.broadcast %83 : vector<8x1xf32> to vector<8x8xf32>
    %85 = arith.mulf %80, %84 : vector<8x8xf32>
    %cst_30 = arith.constant dense<0.000000e+00> : vector<8x8xf32>
    %86 = tpu.matmul %85, %72, %cst_30 {dimension_numbers = #tpu.dot_dimension_numbers<[1], [0], [0], [1], [0, 0, 1, 1], [], []>} : vector<8x8xf32>, vector<8x8xf32>, vector<8x8xf32> -> vector<8x8xf32>
    %c0_31 = arith.constant 0 : index
    %c24 = arith.constant 24 : index
    %87 = vector.load %arg8[%c0_31, %c24] : memref<16x32xf32, #tpu.memory_space<vmem>>, vector<8x8xf32>
    tpu.vector_store %arg8[%c0_31, %c24], %86 {strides = array<i32>} : memref<16x32xf32, #tpu.memory_space<vmem>>, vector<8x8xf32>,
    %88 = vector.extract_strided_slice %15 {offsets = [8, 0], sizes = [8, 8], strides = [1, 1]} : vector<16x96xf32> to vector<8x8xf32>
    %89 = vector.extract_strided_slice %15 {offsets = [8, 32], sizes = [8, 8], strides = [1, 1]} : vector<16x96xf32> to vector<8x8xf32>
    %90 = vector.extract_strided_slice %15 {offsets = [8, 64], sizes = [8, 8], strides = [1, 1]} : vector<16x96xf32> to vector<8x8xf32>
    %cst_32 = arith.constant dense<0.000000e+00> : vector<8x8xf32>
    %91 = tpu.matmul %88, %89, %cst_32 {dimension_numbers = #tpu.dot_dimension_numbers<[1], [1], [0], [0], [0, 0, 1, 0], [], []>} : vector<8x8xf32>, vector<8x8xf32>, vector<8x8xf32> -> vector<8x8xf32>
    %cst_33 = arith.constant 0.353553385 : f32
    %92 = vector.broadcast %cst_33 : f32 to vector<8x8xf32>
    %93 = arith.mulf %91, %92 : vector<8x8xf32>
    %cst_34 = arith.constant dense<0xFF800000> : vector<8xf32>
    %94 = vector.multi_reduction <maximumf>, %93, %cst_34 [1] : vector<8x8xf32> to vector<8xf32>
    %95 = vector.shape_cast %94 : vector<8xf32> to vector<8x1xf32>
    %96 = vector.broadcast %95 : vector<8x1xf32> to vector<8x8xf32>
    %97 = arith.subf %93, %96 : vector<8x8xf32>
    %98 = math.exp %97 : vector<8x8xf32>
    %cst_35 = arith.constant dense<0.000000e+00> : vector<8xf32>
    %99 = vector.multi_reduction <add>, %98, %cst_35 [1] : vector<8x8xf32> to vector<8xf32>
    %100 = vector.shape_cast %99 : vector<8xf32> to vector<8x1xf32>
    %101 = tpu.reciprocal %100 {approx = true} : vector<8x1xf32> -> vector<8x1xf32>
    %102 = vector.broadcast %101 : vector<8x1xf32> to vector<8x8xf32>
    %103 = arith.mulf %98, %102 : vector<8x8xf32>
    %cst_36 = arith.constant dense<0.000000e+00> : vector<8x8xf32>
    %104 = tpu.matmul %103, %90, %cst_36 {dimension_numbers = #tpu.dot_dimension_numbers<[1], [0], [0], [1], [0, 0, 1, 1], [], []>} : vector<8x8xf32>, vector<8x8xf32>, vector<8x8xf32> -> vector<8x8xf32>
    %c8_37 = arith.constant 8 : index
    %c0_38 = arith.constant 0 : index
    %105 = vector.load %arg8[%c8_37, %c0_38] : memref<16x32xf32, #tpu.memory_space<vmem>>, vector<8x8xf32>
    tpu.vector_store %arg8[%c8_37, %c0_38], %104 {strides = array<i32>} : memref<16x32xf32, #tpu.memory_space<vmem>>, vector<8x8xf32>,
    %106 = vector.extract_strided_slice %15 {offsets = [8, 8], sizes = [8, 8], strides = [1, 1]} : vector<16x96xf32> to vector<8x8xf32>
    %107 = vector.extract_strided_slice %15 {offsets = [8, 40], sizes = [8, 8], strides = [1, 1]} : vector<16x96xf32> to vector<8x8xf32>
    %108 = vector.extract_strided_slice %15 {offsets = [8, 72], sizes = [8, 8], strides = [1, 1]} : vector<16x96xf32> to vector<8x8xf32>
    %cst_39 = arith.constant dense<0.000000e+00> : vector<8x8xf32>
    %109 = tpu.matmul %106, %107, %cst_39 {dimension_numbers = #tpu.dot_dimension_numbers<[1], [1], [0], [0], [0, 0, 1, 0], [], []>} : vector<8x8xf32>, vector<8x8xf32>, vector<8x8xf32> -> vector<8x8xf32>
    %cst_40 = arith.constant 0.353553385 : f32
    %110 = vector.broadcast %cst_40 : f32 to vector<8x8xf32>
    %111 = arith.mulf %109, %110 : vector<8x8xf32>
    %cst_41 = arith.constant dense<0xFF800000> : vector<8xf32>
    %112 = vector.multi_reduction <maximumf>, %111, %cst_41 [1] : vector<8x8xf32> to vector<8xf32>
    %113 = vector.shape_cast %112 : vector<8xf32> to vector<8x1xf32>
    %114 = vector.broadcast %113 : vector<8x1xf32> to vector<8x8xf32>
    %115 = arith.subf %111, %114 : vector<8x8xf32>
    %116 = math.exp %115 : vector<8x8xf32>
    %cst_42 = arith.constant dense<0.000000e+00> : vector<8xf32>
    %117 = vector.multi_reduction <add>, %116, %cst_42 [1] : vector<8x8xf32> to vector<8xf32>
    %118 = vector.shape_cast %117 : vector<8xf32> to vector<8x1xf32>
    %119 = tpu.reciprocal %118 {approx = true} : vector<8x1xf32> -> vector<8x1xf32>
    %120 = vector.broadcast %119 : vector<8x1xf32> to vector<8x8xf32>
    %121 = arith.mulf %116, %120 : vector<8x8xf32>
    %cst_43 = arith.constant dense<0.000000e+00> : vector<8x8xf32>
    %122 = tpu.matmul %121, %108, %cst_43 {dimension_numbers = #tpu.dot_dimension_numbers<[1], [0], [0], [1], [0, 0, 1, 1], [], []>} : vector<8x8xf32>, vector<8x8xf32>, vector<8x8xf32> -> vector<8x8xf32>
    %c8_44 = arith.constant 8 : index
    %c8_45 = arith.constant 8 : index
    %123 = vector.load %arg8[%c8_44, %c8_45] : memref<16x32xf32, #tpu.memory_space<vmem>>, vector<8x8xf32>
    tpu.vector_store %arg8[%c8_44, %c8_45], %122 {strides = array<i32>} : memref<16x32xf32, #tpu.memory_space<vmem>>, vector<8x8xf32>,
    %124 = vector.extract_strided_slice %15 {offsets = [8, 16], sizes = [8, 8], strides = [1, 1]} : vector<16x96xf32> to vector<8x8xf32>
    %125 = vector.extract_strided_slice %15 {offsets = [8, 48], sizes = [8, 8], strides = [1, 1]} : vector<16x96xf32> to vector<8x8xf32>
    %126 = vector.extract_strided_slice %15 {offsets = [8, 80], sizes = [8, 8], strides = [1, 1]} : vector<16x96xf32> to vector<8x8xf32>
    %cst_46 = arith.constant dense<0.000000e+00> : vector<8x8xf32>
    %127 = tpu.matmul %124, %125, %cst_46 {dimension_numbers = #tpu.dot_dimension_numbers<[1], [1], [0], [0], [0, 0, 1, 0], [], []>} : vector<8x8xf32>, vector<8x8xf32>, vector<8x8xf32> -> vector<8x8xf32>
    %cst_47 = arith.constant 0.353553385 : f32
    %128 = vector.broadcast %cst_47 : f32 to vector<8x8xf32>
    %129 = arith.mulf %127, %128 : vector<8x8xf32>
    %cst_48 = arith.constant dense<0xFF800000> : vector<8xf32>
    %130 = vector.multi_reduction <maximumf>, %129, %cst_48 [1] : vector<8x8xf32> to vector<8xf32>
    %131 = vector.shape_cast %130 : vector<8xf32> to vector<8x1xf32>
    %132 = vector.broadcast %131 : vector<8x1xf32> to vector<8x8xf32>
    %133 = arith.subf %129, %132 : vector<8x8xf32>
    %134 = math.exp %133 : vector<8x8xf32>
    %cst_49 = arith.constant dense<0.000000e+00> : vector<8xf32>
    %135 = vector.multi_reduction <add>, %134, %cst_49 [1] : vector<8x8xf32> to vector<8xf32>
    %136 = vector.shape_cast %135 : vector<8xf32> to vector<8x1xf32>
    %137 = tpu.reciprocal %136 {approx = true} : vector<8x1xf32> -> vector<8x1xf32>
    %138 = vector.broadcast %137 : vector<8x1xf32> to vector<8x8xf32>
    %139 = arith.mulf %134, %138 : vector<8x8xf32>
    %cst_50 = arith.constant dense<0.000000e+00> : vector<8x8xf32>
    %140 = tpu.matmul %139, %126, %cst_50 {dimension_numbers = #tpu.dot_dimension_numbers<[1], [0], [0], [1], [0, 0, 1, 1], [], []>} : vector<8x8xf32>, vector<8x8xf32>, vector<8x8xf32> -> vector<8x8xf32>
    %c8_51 = arith.constant 8 : index
    %c16_52 = arith.constant 16 : index
    %141 = vector.load %arg8[%c8_51, %c16_52] : memref<16x32xf32, #tpu.memory_space<vmem>>, vector<8x8xf32>
    tpu.vector_store %arg8[%c8_51, %c16_52], %140 {strides = array<i32>} : memref<16x32xf32, #tpu.memory_space<vmem>>, vector<8x8xf32>,
    %142 = vector.extract_strided_slice %15 {offsets = [8, 24], sizes = [8, 8], strides = [1, 1]} : vector<16x96xf32> to vector<8x8xf32>
    %143 = vector.extract_strided_slice %15 {offsets = [8, 56], sizes = [8, 8], strides = [1, 1]} : vector<16x96xf32> to vector<8x8xf32>
    %144 = vector.extract_strided_slice %15 {offsets = [8, 88], sizes = [8, 8], strides = [1, 1]} : vector<16x96xf32> to vector<8x8xf32>
    %cst_53 = arith.constant dense<0.000000e+00> : vector<8x8xf32>
    %145 = tpu.matmul %142, %143, %cst_53 {dimension_numbers = #tpu.dot_dimension_numbers<[1], [1], [0], [0], [0, 0, 1, 0], [], []>} : vector<8x8xf32>, vector<8x8xf32>, vector<8x8xf32> -> vector<8x8xf32>
    %cst_54 = arith.constant 0.353553385 : f32
    %146 = vector.broadcast %cst_54 : f32 to vector<8x8xf32>
    %147 = arith.mulf %145, %146 : vector<8x8xf32>
    %cst_55 = arith.constant dense<0xFF800000> : vector<8xf32>
    %148 = vector.multi_reduction <maximumf>, %147, %cst_55 [1] : vector<8x8xf32> to vector<8xf32>
    %149 = vector.shape_cast %148 : vector<8xf32> to vector<8x1xf32>
    %150 = vector.broadcast %149 : vector<8x1xf32> to vector<8x8xf32>
    %151 = arith.subf %147, %150 : vector<8x8xf32>
    %152 = math.exp %151 : vector<8x8xf32>
    %cst_56 = arith.constant dense<0.000000e+00> : vector<8xf32>
    %153 = vector.multi_reduction <add>, %152, %cst_56 [1] : vector<8x8xf32> to vector<8xf32>
    %154 = vector.shape_cast %153 : vector<8xf32> to vector<8x1xf32>
    %155 = tpu.reciprocal %154 {approx = true} : vector<8x1xf32> -> vector<8x1xf32>
    %156 = vector.broadcast %155 : vector<8x1xf32> to vector<8x8xf32>
    %157 = arith.mulf %152, %156 : vector<8x8xf32>
    %cst_57 = arith.constant dense<0.000000e+00> : vector<8x8xf32>
    %158 = tpu.matmul %157, %144, %cst_57 {dimension_numbers = #tpu.dot_dimension_numbers<[1], [0], [0], [1], [0, 0, 1, 1], [], []>} : vector<8x8xf32>, vector<8x8xf32>, vector<8x8xf32> -> vector<8x8xf32>
    %c8_58 = arith.constant 8 : index
    %c24_59 = arith.constant 24 : index
    %159 = vector.load %arg8[%c8_58, %c24_59] : memref<16x32xf32, #tpu.memory_space<vmem>>, vector<8x8xf32>
    tpu.vector_store %arg8[%c8_58, %c24_59], %158 {strides = array<i32>} : memref<16x32xf32, #tpu.memory_space<vmem>>, vector<8x8xf32>,
    %c0_60 = arith.constant 0 : index
    %c0_61 = arith.constant 0 : index
    %160 = vector.load %arg8[%c0_60, %c0_61] : memref<16x32xf32, #tpu.memory_space<vmem>>, vector<16x32xf32>
    %c0_62 = arith.constant 0 : index
    %c0_63 = arith.constant 0 : index
    %c0_64 = arith.constant 0 : index
    %161 = vector.load %arg3[%c0_62, %c0_63, %c0_64] : memref<2x32x32xf32, #tpu.memory_space<vmem>>, vector<1x32x32xf32>
    %162 = vector.shape_cast %161 : vector<1x32x32xf32> to vector<32x32xf32>
    %cst_65 = arith.constant dense<0.000000e+00> : vector<16x32xf32>
    %163 = tpu.matmul %160, %162, %cst_65 {dimension_numbers = #tpu.dot_dimension_numbers<[1], [0], [0], [1], [0, 0, 1, 1], [], []>} : vector<16x32xf32>, vector<32x32xf32>, vector<16x32xf32> -> vector<16x32xf32>
    %164 = vector.broadcast %5 : vector<1x32xf32> to vector<16x32xf32>
    %165 = arith.addf %163, %164 : vector<16x32xf32>
    %166 = arith.addf %165, %0 : vector<16x32xf32>
    %cst_66 = arith.constant dense<0.000000e+00> : vector<16xf32>
    %167 = vector.multi_reduction <add>, %166, %cst_66 [1] : vector<16x32xf32> to vector<16xf32>
    %168 = vector.shape_cast %167 : vector<16xf32> to vector<16x1xf32>
    %cst_67 = arith.constant 3.200000e+01 : f32
    %169 = vector.broadcast %cst_67 : f32 to vector<16x1xf32>
    %170 = arith.divf %168, %169 : vector<16x1xf32>
    %171 = vector.broadcast %170 : vector<16x1xf32> to vector<16x32xf32>
    %172 = arith.subf %166, %171 : vector<16x32xf32>
    %173 = arith.mulf %172, %172 : vector<16x32xf32>
    %cst_68 = arith.constant dense<0.000000e+00> : vector<16xf32>
    %174 = vector.multi_reduction <add>, %173, %cst_68 [1] : vector<16x32xf32> to vector<16xf32>
    %175 = vector.shape_cast %174 : vector<16xf32> to vector<16x1xf32>
    %cst_69 = arith.constant 3.200000e+01 : f32
    %176 = vector.broadcast %cst_69 : f32 to vector<16x1xf32>
    %177 = arith.divf %175, %176 : vector<16x1xf32>
    %cst_70 = arith.constant 9.99999996E-13 : f32
    %178 = vector.broadcast %cst_70 : f32 to vector<16x1xf32>
    %179 = arith.addf %177, %178 : vector<16x1xf32>
    %180 = math.rsqrt %179 : vector<16x1xf32>
    %181 = vector.broadcast %180 : vector<16x1xf32> to vector<16x32xf32>
    %182 = arith.mulf %172, %181 : vector<16x32xf32>
    %183 = vector.broadcast %6 : vector<1x32xf32> to vector<16x32xf32>
    %184 = arith.mulf %182, %183 : vector<16x32xf32>
    %185 = vector.broadcast %7 : vector<1x32xf32> to vector<16x32xf32>
    %186 = arith.addf %184, %185 : vector<16x32xf32>
    %c0_71 = arith.constant 0 : index
    %c0_72 = arith.constant 0 : index
    %c0_73 = arith.constant 0 : index
    %187 = vector.load %arg4[%c0_71, %c0_72, %c0_73] : memref<2x32x64xf32, #tpu.memory_space<vmem>>, vector<1x32x64xf32>
    %188 = vector.shape_cast %187 : vector<1x32x64xf32> to vector<32x64xf32>
    %cst_74 = arith.constant dense<0.000000e+00> : vector<16x64xf32>
    %189 = tpu.matmul %186, %188, %cst_74 {dimension_numbers = #tpu.dot_dimension_numbers<[1], [0], [0], [1], [0, 0, 1, 1], [], []>} : vector<16x32xf32>, vector<32x64xf32>, vector<16x64xf32> -> vector<16x64xf32>
    %190 = vector.broadcast %4 : vector<1x64xf32> to vector<16x64xf32>
    %191 = arith.addf %189, %190 : vector<16x64xf32>
    %cst_75 = arith.constant 5.000000e-01 : f32
    %192 = vector.broadcast %cst_75 : f32 to vector<16x64xf32>
    %193 = arith.mulf %192, %191 : vector<16x64xf32>
    %cst_76 = arith.constant 0.707106769 : f32
    %194 = vector.broadcast %cst_76 : f32 to vector<16x64xf32>
    %195 = arith.mulf %191, %194 : vector<16x64xf32>
    %196 = math.erf %195 : vector<16x64xf32>
    %cst_77 = arith.constant 1.000000e+00 : f32
    %197 = vector.broadcast %cst_77 : f32 to vector<16x64xf32>
    %198 = arith.addf %197, %196 : vector<16x64xf32>
    %199 = arith.mulf %193, %198 : vector<16x64xf32>
    %c0_78 = arith.constant 0 : index
    %c0_79 = arith.constant 0 : index
    %c0_80 = arith.constant 0 : index
    %200 = vector.load %arg5[%c0_78, %c0_79, %c0_80] : memref<2x64x32xf32, #tpu.memory_space<vmem>>, vector<1x64x32xf32>
    %201 = vector.shape_cast %200 : vector<1x64x32xf32> to vector<64x32xf32>
    %cst_81 = arith.constant dense<0.000000e+00> : vector<16x32xf32>
    %202 = tpu.matmul %199, %201, %cst_81 {dimension_numbers = #tpu.dot_dimension_numbers<[1], [0], [0], [1], [0, 0, 1, 1], [], []>} : vector<16x64xf32>, vector<64x32xf32>, vector<16x32xf32> -> vector<16x32xf32>
    %203 = vector.broadcast %8 : vector<1x32xf32> to vector<16x32xf32>
    %204 = arith.addf %202, %203 : vector<16x32xf32>
    %205 = arith.addf %204, %186 : vector<16x32xf32>
    %cst_82 = arith.constant dense<0.000000e+00> : vector<16xf32>
    %206 = vector.multi_reduction <add>, %205, %cst_82 [1] : vector<16x32xf32> to vector<16xf32>
    %207 = vector.shape_cast %206 : vector<16xf32> to vector<16x1xf32>
    %cst_83 = arith.constant 3.200000e+01 : f32
    %208 = vector.broadcast %cst_83 : f32 to vector<16x1xf32>
    %209 = arith.divf %207, %208 : vector<16x1xf32>
    %210 = vector.broadcast %209 : vector<16x1xf32> to vector<16x32xf32>
    %211 = arith.subf %205, %210 : vector<16x32xf32>
    %212 = arith.mulf %211, %211 : vector<16x32xf32>
    %cst_84 = arith.constant dense<0.000000e+00> : vector<16xf32>
    %213 = vector.multi_reduction <add>, %212, %cst_84 [1] : vector<16x32xf32> to vector<16xf32>
    %214 = vector.shape_cast %213 : vector<16xf32> to vector<16x1xf32>
    %cst_85 = arith.constant 3.200000e+01 : f32
    %215 = vector.broadcast %cst_85 : f32 to vector<16x1xf32>
    %216 = arith.divf %214, %215 : vector<16x1xf32>
    %cst_86 = arith.constant 9.99999996E-13 : f32
    %217 = vector.broadcast %cst_86 : f32 to vector<16x1xf32>
    %218 = arith.addf %216, %217 : vector<16x1xf32>
    %219 = math.rsqrt %218 : vector<16x1xf32>
    %220 = vector.broadcast %219 : vector<16x1xf32> to vector<16x32xf32>
    %221 = arith.mulf %211, %220 : vector<16x32xf32>
    %222 = vector.broadcast %9 : vector<1x32xf32> to vector<16x32xf32>
    %223 = arith.mulf %221, %222 : vector<16x32xf32>
    %224 = vector.broadcast %10 : vector<1x32xf32> to vector<16x32xf32>
    %225 = arith.addf %223, %224 : vector<16x32xf32>
    %c1 = arith.constant 1 : index
    %c0_87 = arith.constant 0 : index
    %c0_88 = arith.constant 0 : index
    %226 = vector.load %arg6[%c1, %c0_87, %c0_88] : memref<2x8x96xf32, #tpu.memory_space<vmem>>, vector<1x8x96xf32>
    %227 = vector.shape_cast %226 : vector<1x8x96xf32> to vector<8x96xf32>
    %228 = vector.extract_strided_slice %227 {offsets = [0, 0], sizes = [1, 96], strides = [1, 1]} : vector<8x96xf32> to vector<1x96xf32>
    %229 = vector.extract_strided_slice %227 {offsets = [1, 0], sizes = [1, 64], strides = [1, 1]} : vector<8x96xf32> to vector<1x64xf32>
    %230 = vector.extract_strided_slice %227 {offsets = [2, 0], sizes = [1, 32], strides = [1, 1]} : vector<8x96xf32> to vector<1x32xf32>
    %231 = vector.extract_strided_slice %227 {offsets = [3, 0], sizes = [1, 32], strides = [1, 1]} : vector<8x96xf32> to vector<1x32xf32>
    %232 = vector.extract_strided_slice %227 {offsets = [4, 0], sizes = [1, 32], strides = [1, 1]} : vector<8x96xf32> to vector<1x32xf32>
    %233 = vector.extract_strided_slice %227 {offsets = [5, 0], sizes = [1, 32], strides = [1, 1]} : vector<8x96xf32> to vector<1x32xf32>
    %234 = vector.extract_strided_slice %227 {offsets = [6, 0], sizes = [1, 32], strides = [1, 1]} : vector<8x96xf32> to vector<1x32xf32>
    %235 = vector.extract_strided_slice %227 {offsets = [7, 0], sizes = [1, 32], strides = [1, 1]} : vector<8x96xf32> to vector<1x32xf32>
    %c1_89 = arith.constant 1 : index
    %c0_90 = arith.constant 0 : index
    %c0_91 = arith.constant 0 : index
    %236 = vector.load %arg2[%c1_89, %c0_90, %c0_91] : memref<2x32x96xf32, #tpu.memory_space<vmem>>, vector<1x32x96xf32>
    %237 = vector.shape_cast %236 : vector<1x32x96xf32> to vector<32x96xf32>
    %cst_92 = arith.constant dense<0.000000e+00> : vector<16x96xf32>
    %238 = tpu.matmul %225, %237, %cst_92 {dimension_numbers = #tpu.dot_dimension_numbers<[1], [0], [0], [1], [0, 0, 1, 1], [], []>} : vector<16x32xf32>, vector<32x96xf32>, vector<16x96xf32> -> vector<16x96xf32>
    %239 = vector.broadcast %228 : vector<1x96xf32> to vector<16x96xf32>
    %240 = arith.addf %238, %239 : vector<16x96xf32>
    %241 = vector.extract_strided_slice %240 {offsets = [0, 0], sizes = [8, 8], strides = [1, 1]} : vector<16x96xf32> to vector<8x8xf32>
    %242 = vector.extract_strided_slice %240 {offsets = [0, 32], sizes = [8, 8], strides = [1, 1]} : vector<16x96xf32> to vector<8x8xf32>
    %243 = vector.extract_strided_slice %240 {offsets = [0, 64], sizes = [8, 8], strides = [1, 1]} : vector<16x96xf32> to vector<8x8xf32>
    %cst_93 = arith.constant dense<0.000000e+00> : vector<8x8xf32>
    %244 = tpu.matmul %241, %242, %cst_93 {dimension_numbers = #tpu.dot_dimension_numbers<[1], [1], [0], [0], [0, 0, 1, 0], [], []>} : vector<8x8xf32>, vector<8x8xf32>, vector<8x8xf32> -> vector<8x8xf32>
    %cst_94 = arith.constant 0.353553385 : f32
    %245 = vector.broadcast %cst_94 : f32 to vector<8x8xf32>
    %246 = arith.mulf %244, %245 : vector<8x8xf32>
    %cst_95 = arith.constant dense<0xFF800000> : vector<8xf32>
    %247 = vector.multi_reduction <maximumf>, %246, %cst_95 [1] : vector<8x8xf32> to vector<8xf32>
    %248 = vector.shape_cast %247 : vector<8xf32> to vector<8x1xf32>
    %249 = vector.broadcast %248 : vector<8x1xf32> to vector<8x8xf32>
    %250 = arith.subf %246, %249 : vector<8x8xf32>
    %251 = math.exp %250 : vector<8x8xf32>
    %cst_96 = arith.constant dense<0.000000e+00> : vector<8xf32>
    %252 = vector.multi_reduction <add>, %251, %cst_96 [1] : vector<8x8xf32> to vector<8xf32>
    %253 = vector.shape_cast %252 : vector<8xf32> to vector<8x1xf32>
    %254 = tpu.reciprocal %253 {approx = true} : vector<8x1xf32> -> vector<8x1xf32>
    %255 = vector.broadcast %254 : vector<8x1xf32> to vector<8x8xf32>
    %256 = arith.mulf %251, %255 : vector<8x8xf32>
    %cst_97 = arith.constant dense<0.000000e+00> : vector<8x8xf32>
    %257 = tpu.matmul %256, %243, %cst_97 {dimension_numbers = #tpu.dot_dimension_numbers<[1], [0], [0], [1], [0, 0, 1, 1], [], []>} : vector<8x8xf32>, vector<8x8xf32>, vector<8x8xf32> -> vector<8x8xf32>
    %c0_98 = arith.constant 0 : index
    %c0_99 = arith.constant 0 : index
    %258 = vector.load %arg8[%c0_98, %c0_99] : memref<16x32xf32, #tpu.memory_space<vmem>>, vector<8x8xf32>
    tpu.vector_store %arg8[%c0_98, %c0_99], %257 {strides = array<i32>} : memref<16x32xf32, #tpu.memory_space<vmem>>, vector<8x8xf32>,
    %259 = vector.extract_strided_slice %240 {offsets = [0, 8], sizes = [8, 8], strides = [1, 1]} : vector<16x96xf32> to vector<8x8xf32>
    %260 = vector.extract_strided_slice %240 {offsets = [0, 40], sizes = [8, 8], strides = [1, 1]} : vector<16x96xf32> to vector<8x8xf32>
    %261 = vector.extract_strided_slice %240 {offsets = [0, 72], sizes = [8, 8], strides = [1, 1]} : vector<16x96xf32> to vector<8x8xf32>
    %cst_100 = arith.constant dense<0.000000e+00> : vector<8x8xf32>
    %262 = tpu.matmul %259, %260, %cst_100 {dimension_numbers = #tpu.dot_dimension_numbers<[1], [1], [0], [0], [0, 0, 1, 0], [], []>} : vector<8x8xf32>, vector<8x8xf32>, vector<8x8xf32> -> vector<8x8xf32>
    %cst_101 = arith.constant 0.353553385 : f32
    %263 = vector.broadcast %cst_101 : f32 to vector<8x8xf32>
    %264 = arith.mulf %262, %263 : vector<8x8xf32>
    %cst_102 = arith.constant dense<0xFF800000> : vector<8xf32>
    %265 = vector.multi_reduction <maximumf>, %264, %cst_102 [1] : vector<8x8xf32> to vector<8xf32>
    %266 = vector.shape_cast %265 : vector<8xf32> to vector<8x1xf32>
    %267 = vector.broadcast %266 : vector<8x1xf32> to vector<8x8xf32>
    %268 = arith.subf %264, %267 : vector<8x8xf32>
    %269 = math.exp %268 : vector<8x8xf32>
    %cst_103 = arith.constant dense<0.000000e+00> : vector<8xf32>
    %270 = vector.multi_reduction <add>, %269, %cst_103 [1] : vector<8x8xf32> to vector<8xf32>
    %271 = vector.shape_cast %270 : vector<8xf32> to vector<8x1xf32>
    %272 = tpu.reciprocal %271 {approx = true} : vector<8x1xf32> -> vector<8x1xf32>
    %273 = vector.broadcast %272 : vector<8x1xf32> to vector<8x8xf32>
    %274 = arith.mulf %269, %273 : vector<8x8xf32>
    %cst_104 = arith.constant dense<0.000000e+00> : vector<8x8xf32>
    %275 = tpu.matmul %274, %261, %cst_104 {dimension_numbers = #tpu.dot_dimension_numbers<[1], [0], [0], [1], [0, 0, 1, 1], [], []>} : vector<8x8xf32>, vector<8x8xf32>, vector<8x8xf32> -> vector<8x8xf32>
    %c0_105 = arith.constant 0 : index
    %c8_106 = arith.constant 8 : index
    %276 = vector.load %arg8[%c0_105, %c8_106] : memref<16x32xf32, #tpu.memory_space<vmem>>, vector<8x8xf32>
    tpu.vector_store %arg8[%c0_105, %c8_106], %275 {strides = array<i32>} : memref<16x32xf32, #tpu.memory_space<vmem>>, vector<8x8xf32>,
    %277 = vector.extract_strided_slice %240 {offsets = [0, 16], sizes = [8, 8], strides = [1, 1]} : vector<16x96xf32> to vector<8x8xf32>
    %278 = vector.extract_strided_slice %240 {offsets = [0, 48], sizes = [8, 8], strides = [1, 1]} : vector<16x96xf32> to vector<8x8xf32>
    %279 = vector.extract_strided_slice %240 {offsets = [0, 80], sizes = [8, 8], strides = [1, 1]} : vector<16x96xf32> to vector<8x8xf32>
    %cst_107 = arith.constant dense<0.000000e+00> : vector<8x8xf32>
    %280 = tpu.matmul %277, %278, %cst_107 {dimension_numbers = #tpu.dot_dimension_numbers<[1], [1], [0], [0], [0, 0, 1, 0], [], []>} : vector<8x8xf32>, vector<8x8xf32>, vector<8x8xf32> -> vector<8x8xf32>
    %cst_108 = arith.constant 0.353553385 : f32
    %281 = vector.broadcast %cst_108 : f32 to vector<8x8xf32>
    %282 = arith.mulf %280, %281 : vector<8x8xf32>
    %cst_109 = arith.constant dense<0xFF800000> : vector<8xf32>
    %283 = vector.multi_reduction <maximumf>, %282, %cst_109 [1] : vector<8x8xf32> to vector<8xf32>
    %284 = vector.shape_cast %283 : vector<8xf32> to vector<8x1xf32>
    %285 = vector.broadcast %284 : vector<8x1xf32> to vector<8x8xf32>
    %286 = arith.subf %282, %285 : vector<8x8xf32>
    %287 = math.exp %286 : vector<8x8xf32>
    %cst_110 = arith.constant dense<0.000000e+00> : vector<8xf32>
    %288 = vector.multi_reduction <add>, %287, %cst_110 [1] : vector<8x8xf32> to vector<8xf32>
    %289 = vector.shape_cast %288 : vector<8xf32> to vector<8x1xf32>
    %290 = tpu.reciprocal %289 {approx = true} : vector<8x1xf32> -> vector<8x1xf32>
    %291 = vector.broadcast %290 : vector<8x1xf32> to vector<8x8xf32>
    %292 = arith.mulf %287, %291 : vector<8x8xf32>
    %cst_111 = arith.constant dense<0.000000e+00> : vector<8x8xf32>
    %293 = tpu.matmul %292, %279, %cst_111 {dimension_numbers = #tpu.dot_dimension_numbers<[1], [0], [0], [1], [0, 0, 1, 1], [], []>} : vector<8x8xf32>, vector<8x8xf32>, vector<8x8xf32> -> vector<8x8xf32>
    %c0_112 = arith.constant 0 : index
    %c16_113 = arith.constant 16 : index
    %294 = vector.load %arg8[%c0_112, %c16_113] : memref<16x32xf32, #tpu.memory_space<vmem>>, vector<8x8xf32>
    tpu.vector_store %arg8[%c0_112, %c16_113], %293 {strides = array<i32>} : memref<16x32xf32, #tpu.memory_space<vmem>>, vector<8x8xf32>,
    %295 = vector.extract_strided_slice %240 {offsets = [0, 24], sizes = [8, 8], strides = [1, 1]} : vector<16x96xf32> to vector<8x8xf32>
    %296 = vector.extract_strided_slice %240 {offsets = [0, 56], sizes = [8, 8], strides = [1, 1]} : vector<16x96xf32> to vector<8x8xf32>
    %297 = vector.extract_strided_slice %240 {offsets = [0, 88], sizes = [8, 8], strides = [1, 1]} : vector<16x96xf32> to vector<8x8xf32>
    %cst_114 = arith.constant dense<0.000000e+00> : vector<8x8xf32>
    %298 = tpu.matmul %295, %296, %cst_114 {dimension_numbers = #tpu.dot_dimension_numbers<[1], [1], [0], [0], [0, 0, 1, 0], [], []>} : vector<8x8xf32>, vector<8x8xf32>, vector<8x8xf32> -> vector<8x8xf32>
    %cst_115 = arith.constant 0.353553385 : f32
    %299 = vector.broadcast %cst_115 : f32 to vector<8x8xf32>
    %300 = arith.mulf %298, %299 : vector<8x8xf32>
    %cst_116 = arith.constant dense<0xFF800000> : vector<8xf32>
    %301 = vector.multi_reduction <maximumf>, %300, %cst_116 [1] : vector<8x8xf32> to vector<8xf32>
    %302 = vector.shape_cast %301 : vector<8xf32> to vector<8x1xf32>
    %303 = vector.broadcast %302 : vector<8x1xf32> to vector<8x8xf32>
    %304 = arith.subf %300, %303 : vector<8x8xf32>
    %305 = math.exp %304 : vector<8x8xf32>
    %cst_117 = arith.constant dense<0.000000e+00> : vector<8xf32>
    %306 = vector.multi_reduction <add>, %305, %cst_117 [1] : vector<8x8xf32> to vector<8xf32>
    %307 = vector.shape_cast %306 : vector<8xf32> to vector<8x1xf32>
    %308 = tpu.reciprocal %307 {approx = true} : vector<8x1xf32> -> vector<8x1xf32>
    %309 = vector.broadcast %308 : vector<8x1xf32> to vector<8x8xf32>
    %310 = arith.mulf %305, %309 : vector<8x8xf32>
    %cst_118 = arith.constant dense<0.000000e+00> : vector<8x8xf32>
    %311 = tpu.matmul %310, %297, %cst_118 {dimension_numbers = #tpu.dot_dimension_numbers<[1], [0], [0], [1], [0, 0, 1, 1], [], []>} : vector<8x8xf32>, vector<8x8xf32>, vector<8x8xf32> -> vector<8x8xf32>
    %c0_119 = arith.constant 0 : index
    %c24_120 = arith.constant 24 : index
    %312 = vector.load %arg8[%c0_119, %c24_120] : memref<16x32xf32, #tpu.memory_space<vmem>>, vector<8x8xf32>
    tpu.vector_store %arg8[%c0_119, %c24_120], %311 {strides = array<i32>} : memref<16x32xf32, #tpu.memory_space<vmem>>, vector<8x8xf32>,
    %313 = vector.extract_strided_slice %240 {offsets = [8, 0], sizes = [8, 8], strides = [1, 1]} : vector<16x96xf32> to vector<8x8xf32>
    %314 = vector.extract_strided_slice %240 {offsets = [8, 32], sizes = [8, 8], strides = [1, 1]} : vector<16x96xf32> to vector<8x8xf32>
    %315 = vector.extract_strided_slice %240 {offsets = [8, 64], sizes = [8, 8], strides = [1, 1]} : vector<16x96xf32> to vector<8x8xf32>
    %cst_121 = arith.constant dense<0.000000e+00> : vector<8x8xf32>
    %316 = tpu.matmul %313, %314, %cst_121 {dimension_numbers = #tpu.dot_dimension_numbers<[1], [1], [0], [0], [0, 0, 1, 0], [], []>} : vector<8x8xf32>, vector<8x8xf32>, vector<8x8xf32> -> vector<8x8xf32>
    %cst_122 = arith.constant 0.353553385 : f32
    %317 = vector.broadcast %cst_122 : f32 to vector<8x8xf32>
    %318 = arith.mulf %316, %317 : vector<8x8xf32>
    %cst_123 = arith.constant dense<0xFF800000> : vector<8xf32>
    %319 = vector.multi_reduction <maximumf>, %318, %cst_123 [1] : vector<8x8xf32> to vector<8xf32>
    %320 = vector.shape_cast %319 : vector<8xf32> to vector<8x1xf32>
    %321 = vector.broadcast %320 : vector<8x1xf32> to vector<8x8xf32>
    %322 = arith.subf %318, %321 : vector<8x8xf32>
    %323 = math.exp %322 : vector<8x8xf32>
    %cst_124 = arith.constant dense<0.000000e+00> : vector<8xf32>
    %324 = vector.multi_reduction <add>, %323, %cst_124 [1] : vector<8x8xf32> to vector<8xf32>
    %325 = vector.shape_cast %324 : vector<8xf32> to vector<8x1xf32>
    %326 = tpu.reciprocal %325 {approx = true} : vector<8x1xf32> -> vector<8x1xf32>
    %327 = vector.broadcast %326 : vector<8x1xf32> to vector<8x8xf32>
    %328 = arith.mulf %323, %327 : vector<8x8xf32>
    %cst_125 = arith.constant dense<0.000000e+00> : vector<8x8xf32>
    %329 = tpu.matmul %328, %315, %cst_125 {dimension_numbers = #tpu.dot_dimension_numbers<[1], [0], [0], [1], [0, 0, 1, 1], [], []>} : vector<8x8xf32>, vector<8x8xf32>, vector<8x8xf32> -> vector<8x8xf32>
    %c8_126 = arith.constant 8 : index
    %c0_127 = arith.constant 0 : index
    %330 = vector.load %arg8[%c8_126, %c0_127] : memref<16x32xf32, #tpu.memory_space<vmem>>, vector<8x8xf32>
    tpu.vector_store %arg8[%c8_126, %c0_127], %329 {strides = array<i32>} : memref<16x32xf32, #tpu.memory_space<vmem>>, vector<8x8xf32>,
    %331 = vector.extract_strided_slice %240 {offsets = [8, 8], sizes = [8, 8], strides = [1, 1]} : vector<16x96xf32> to vector<8x8xf32>
    %332 = vector.extract_strided_slice %240 {offsets = [8, 40], sizes = [8, 8], strides = [1, 1]} : vector<16x96xf32> to vector<8x8xf32>
    %333 = vector.extract_strided_slice %240 {offsets = [8, 72], sizes = [8, 8], strides = [1, 1]} : vector<16x96xf32> to vector<8x8xf32>
    %cst_128 = arith.constant dense<0.000000e+00> : vector<8x8xf32>
    %334 = tpu.matmul %331, %332, %cst_128 {dimension_numbers = #tpu.dot_dimension_numbers<[1], [1], [0], [0], [0, 0, 1, 0], [], []>} : vector<8x8xf32>, vector<8x8xf32>, vector<8x8xf32> -> vector<8x8xf32>
    %cst_129 = arith.constant 0.353553385 : f32
    %335 = vector.broadcast %cst_129 : f32 to vector<8x8xf32>
    %336 = arith.mulf %334, %335 : vector<8x8xf32>
    %cst_130 = arith.constant dense<0xFF800000> : vector<8xf32>
    %337 = vector.multi_reduction <maximumf>, %336, %cst_130 [1] : vector<8x8xf32> to vector<8xf32>
    %338 = vector.shape_cast %337 : vector<8xf32> to vector<8x1xf32>
    %339 = vector.broadcast %338 : vector<8x1xf32> to vector<8x8xf32>
    %340 = arith.subf %336, %339 : vector<8x8xf32>
    %341 = math.exp %340 : vector<8x8xf32>
    %cst_131 = arith.constant dense<0.000000e+00> : vector<8xf32>
    %342 = vector.multi_reduction <add>, %341, %cst_131 [1] : vector<8x8xf32> to vector<8xf32>
    %343 = vector.shape_cast %342 : vector<8xf32> to vector<8x1xf32>
    %344 = tpu.reciprocal %343 {approx = true} : vector<8x1xf32> -> vector<8x1xf32>
    %345 = vector.broadcast %344 : vector<8x1xf32> to vector<8x8xf32>
    %346 = arith.mulf %341, %345 : vector<8x8xf32>
    %cst_132 = arith.constant dense<0.000000e+00> : vector<8x8xf32>
    %347 = tpu.matmul %346, %333, %cst_132 {dimension_numbers = #tpu.dot_dimension_numbers<[1], [0], [0], [1], [0, 0, 1, 1], [], []>} : vector<8x8xf32>, vector<8x8xf32>, vector<8x8xf32> -> vector<8x8xf32>
    %c8_133 = arith.constant 8 : index
    %c8_134 = arith.constant 8 : index
    %348 = vector.load %arg8[%c8_133, %c8_134] : memref<16x32xf32, #tpu.memory_space<vmem>>, vector<8x8xf32>
    tpu.vector_store %arg8[%c8_133, %c8_134], %347 {strides = array<i32>} : memref<16x32xf32, #tpu.memory_space<vmem>>, vector<8x8xf32>,
    %349 = vector.extract_strided_slice %240 {offsets = [8, 16], sizes = [8, 8], strides = [1, 1]} : vector<16x96xf32> to vector<8x8xf32>
    %350 = vector.extract_strided_slice %240 {offsets = [8, 48], sizes = [8, 8], strides = [1, 1]} : vector<16x96xf32> to vector<8x8xf32>
    %351 = vector.extract_strided_slice %240 {offsets = [8, 80], sizes = [8, 8], strides = [1, 1]} : vector<16x96xf32> to vector<8x8xf32>
    %cst_135 = arith.constant dense<0.000000e+00> : vector<8x8xf32>
    %352 = tpu.matmul %349, %350, %cst_135 {dimension_numbers = #tpu.dot_dimension_numbers<[1], [1], [0], [0], [0, 0, 1, 0], [], []>} : vector<8x8xf32>, vector<8x8xf32>, vector<8x8xf32> -> vector<8x8xf32>
    %cst_136 = arith.constant 0.353553385 : f32
    %353 = vector.broadcast %cst_136 : f32 to vector<8x8xf32>
    %354 = arith.mulf %352, %353 : vector<8x8xf32>
    %cst_137 = arith.constant dense<0xFF800000> : vector<8xf32>
    %355 = vector.multi_reduction <maximumf>, %354, %cst_137 [1] : vector<8x8xf32> to vector<8xf32>
    %356 = vector.shape_cast %355 : vector<8xf32> to vector<8x1xf32>
    %357 = vector.broadcast %356 : vector<8x1xf32> to vector<8x8xf32>
    %358 = arith.subf %354, %357 : vector<8x8xf32>
    %359 = math.exp %358 : vector<8x8xf32>
    %cst_138 = arith.constant dense<0.000000e+00> : vector<8xf32>
    %360 = vector.multi_reduction <add>, %359, %cst_138 [1] : vector<8x8xf32> to vector<8xf32>
    %361 = vector.shape_cast %360 : vector<8xf32> to vector<8x1xf32>
    %362 = tpu.reciprocal %361 {approx = true} : vector<8x1xf32> -> vector<8x1xf32>
    %363 = vector.broadcast %362 : vector<8x1xf32> to vector<8x8xf32>
    %364 = arith.mulf %359, %363 : vector<8x8xf32>
    %cst_139 = arith.constant dense<0.000000e+00> : vector<8x8xf32>
    %365 = tpu.matmul %364, %351, %cst_139 {dimension_numbers = #tpu.dot_dimension_numbers<[1], [0], [0], [1], [0, 0, 1, 1], [], []>} : vector<8x8xf32>, vector<8x8xf32>, vector<8x8xf32> -> vector<8x8xf32>
    %c8_140 = arith.constant 8 : index
    %c16_141 = arith.constant 16 : index
    %366 = vector.load %arg8[%c8_140, %c16_141] : memref<16x32xf32, #tpu.memory_space<vmem>>, vector<8x8xf32>
    tpu.vector_store %arg8[%c8_140, %c16_141], %365 {strides = array<i32>} : memref<16x32xf32, #tpu.memory_space<vmem>>, vector<8x8xf32>,
    %367 = vector.extract_strided_slice %240 {offsets = [8, 24], sizes = [8, 8], strides = [1, 1]} : vector<16x96xf32> to vector<8x8xf32>
    %368 = vector.extract_strided_slice %240 {offsets = [8, 56], sizes = [8, 8], strides = [1, 1]} : vector<16x96xf32> to vector<8x8xf32>
    %369 = vector.extract_strided_slice %240 {offsets = [8, 88], sizes = [8, 8], strides = [1, 1]} : vector<16x96xf32> to vector<8x8xf32>
    %cst_142 = arith.constant dense<0.000000e+00> : vector<8x8xf32>
    %370 = tpu.matmul %367, %368, %cst_142 {dimension_numbers = #tpu.dot_dimension_numbers<[1], [1], [0], [0], [0, 0, 1, 0], [], []>} : vector<8x8xf32>, vector<8x8xf32>, vector<8x8xf32> -> vector<8x8xf32>
    %cst_143 = arith.constant 0.353553385 : f32
    %371 = vector.broadcast %cst_143 : f32 to vector<8x8xf32>
    %372 = arith.mulf %370, %371 : vector<8x8xf32>
    %cst_144 = arith.constant dense<0xFF800000> : vector<8xf32>
    %373 = vector.multi_reduction <maximumf>, %372, %cst_144 [1] : vector<8x8xf32> to vector<8xf32>
    %374 = vector.shape_cast %373 : vector<8xf32> to vector<8x1xf32>
    %375 = vector.broadcast %374 : vector<8x1xf32> to vector<8x8xf32>
    %376 = arith.subf %372, %375 : vector<8x8xf32>
    %377 = math.exp %376 : vector<8x8xf32>
    %cst_145 = arith.constant dense<0.000000e+00> : vector<8xf32>
    %378 = vector.multi_reduction <add>, %377, %cst_145 [1] : vector<8x8xf32> to vector<8xf32>
    %379 = vector.shape_cast %378 : vector<8xf32> to vector<8x1xf32>
    %380 = tpu.reciprocal %379 {approx = true} : vector<8x1xf32> -> vector<8x1xf32>
    %381 = vector.broadcast %380 : vector<8x1xf32> to vector<8x8xf32>
    %382 = arith.mulf %377, %381 : vector<8x8xf32>
    %cst_146 = arith.constant dense<0.000000e+00> : vector<8x8xf32>
    %383 = tpu.matmul %382, %369, %cst_146 {dimension_numbers = #tpu.dot_dimension_numbers<[1], [0], [0], [1], [0, 0, 1, 1], [], []>} : vector<8x8xf32>, vector<8x8xf32>, vector<8x8xf32> -> vector<8x8xf32>
    %c8_147 = arith.constant 8 : index
    %c24_148 = arith.constant 24 : index
    %384 = vector.load %arg8[%c8_147, %c24_148] : memref<16x32xf32, #tpu.memory_space<vmem>>, vector<8x8xf32>
    tpu.vector_store %arg8[%c8_147, %c24_148], %383 {strides = array<i32>} : memref<16x32xf32, #tpu.memory_space<vmem>>, vector<8x8xf32>,
    %c0_149 = arith.constant 0 : index
    %c0_150 = arith.constant 0 : index
    %385 = vector.load %arg8[%c0_149, %c0_150] : memref<16x32xf32, #tpu.memory_space<vmem>>, vector<16x32xf32>
    %c1_151 = arith.constant 1 : index
    %c0_152 = arith.constant 0 : index
    %c0_153 = arith.constant 0 : index
    %386 = vector.load %arg3[%c1_151, %c0_152, %c0_153] : memref<2x32x32xf32, #tpu.memory_space<vmem>>, vector<1x32x32xf32>
    %387 = vector.shape_cast %386 : vector<1x32x32xf32> to vector<32x32xf32>
    %cst_154 = arith.constant dense<0.000000e+00> : vector<16x32xf32>
    %388 = tpu.matmul %385, %387, %cst_154 {dimension_numbers = #tpu.dot_dimension_numbers<[1], [0], [0], [1], [0, 0, 1, 1], [], []>} : vector<16x32xf32>, vector<32x32xf32>, vector<16x32xf32> -> vector<16x32xf32>
    %389 = vector.broadcast %230 : vector<1x32xf32> to vector<16x32xf32>
    %390 = arith.addf %388, %389 : vector<16x32xf32>
    %391 = arith.addf %390, %225 : vector<16x32xf32>
    %cst_155 = arith.constant dense<0.000000e+00> : vector<16xf32>
    %392 = vector.multi_reduction <add>, %391, %cst_155 [1] : vector<16x32xf32> to vector<16xf32>
    %393 = vector.shape_cast %392 : vector<16xf32> to vector<16x1xf32>
    %cst_156 = arith.constant 3.200000e+01 : f32
    %394 = vector.broadcast %cst_156 : f32 to vector<16x1xf32>
    %395 = arith.divf %393, %394 : vector<16x1xf32>
    %396 = vector.broadcast %395 : vector<16x1xf32> to vector<16x32xf32>
    %397 = arith.subf %391, %396 : vector<16x32xf32>
    %398 = arith.mulf %397, %397 : vector<16x32xf32>
    %cst_157 = arith.constant dense<0.000000e+00> : vector<16xf32>
    %399 = vector.multi_reduction <add>, %398, %cst_157 [1] : vector<16x32xf32> to vector<16xf32>
    %400 = vector.shape_cast %399 : vector<16xf32> to vector<16x1xf32>
    %cst_158 = arith.constant 3.200000e+01 : f32
    %401 = vector.broadcast %cst_158 : f32 to vector<16x1xf32>
    %402 = arith.divf %400, %401 : vector<16x1xf32>
    %cst_159 = arith.constant 9.99999996E-13 : f32
    %403 = vector.broadcast %cst_159 : f32 to vector<16x1xf32>
    %404 = arith.addf %402, %403 : vector<16x1xf32>
    %405 = math.rsqrt %404 : vector<16x1xf32>
    %406 = vector.broadcast %405 : vector<16x1xf32> to vector<16x32xf32>
    %407 = arith.mulf %397, %406 : vector<16x32xf32>
    %408 = vector.broadcast %231 : vector<1x32xf32> to vector<16x32xf32>
    %409 = arith.mulf %407, %408 : vector<16x32xf32>
    %410 = vector.broadcast %232 : vector<1x32xf32> to vector<16x32xf32>
    %411 = arith.addf %409, %410 : vector<16x32xf32>
    %c1_160 = arith.constant 1 : index
    %c0_161 = arith.constant 0 : index
    %c0_162 = arith.constant 0 : index
    %412 = vector.load %arg4[%c1_160, %c0_161, %c0_162] : memref<2x32x64xf32, #tpu.memory_space<vmem>>, vector<1x32x64xf32>
    %413 = vector.shape_cast %412 : vector<1x32x64xf32> to vector<32x64xf32>
    %cst_163 = arith.constant dense<0.000000e+00> : vector<16x64xf32>
    %414 = tpu.matmul %411, %413, %cst_163 {dimension_numbers = #tpu.dot_dimension_numbers<[1], [0], [0], [1], [0, 0, 1, 1], [], []>} : vector<16x32xf32>, vector<32x64xf32>, vector<16x64xf32> -> vector<16x64xf32>
    %415 = vector.broadcast %229 : vector<1x64xf32> to vector<16x64xf32>
    %416 = arith.addf %414, %415 : vector<16x64xf32>
    %cst_164 = arith.constant 5.000000e-01 : f32
    %417 = vector.broadcast %cst_164 : f32 to vector<16x64xf32>
    %418 = arith.mulf %417, %416 : vector<16x64xf32>
    %cst_165 = arith.constant 0.707106769 : f32
    %419 = vector.broadcast %cst_165 : f32 to vector<16x64xf32>
    %420 = arith.mulf %416, %419 : vector<16x64xf32>
    %421 = math.erf %420 : vector<16x64xf32>
    %cst_166 = arith.constant 1.000000e+00 : f32
    %422 = vector.broadcast %cst_166 : f32 to vector<16x64xf32>
    %423 = arith.addf %422, %421 : vector<16x64xf32>
    %424 = arith.mulf %418, %423 : vector<16x64xf32>
    %c1_167 = arith.constant 1 : index
    %c0_168 = arith.constant 0 : index
    %c0_169 = arith.constant 0 : index
    %425 = vector.load %arg5[%c1_167, %c0_168, %c0_169] : memref<2x64x32xf32, #tpu.memory_space<vmem>>, vector<1x64x32xf32>
    %426 = vector.shape_cast %425 : vector<1x64x32xf32> to vector<64x32xf32>
    %cst_170 = arith.constant dense<0.000000e+00> : vector<16x32xf32>
    %427 = tpu.matmul %424, %426, %cst_170 {dimension_numbers = #tpu.dot_dimension_numbers<[1], [0], [0], [1], [0, 0, 1, 1], [], []>} : vector<16x64xf32>, vector<64x32xf32>, vector<16x32xf32> -> vector<16x32xf32>
    %428 = vector.broadcast %233 : vector<1x32xf32> to vector<16x32xf32>
    %429 = arith.addf %427, %428 : vector<16x32xf32>
    %430 = arith.addf %429, %411 : vector<16x32xf32>
    %cst_171 = arith.constant dense<0.000000e+00> : vector<16xf32>
    %431 = vector.multi_reduction <add>, %430, %cst_171 [1] : vector<16x32xf32> to vector<16xf32>
    %432 = vector.shape_cast %431 : vector<16xf32> to vector<16x1xf32>
    %cst_172 = arith.constant 3.200000e+01 : f32
    %433 = vector.broadcast %cst_172 : f32 to vector<16x1xf32>
    %434 = arith.divf %432, %433 : vector<16x1xf32>
    %435 = vector.broadcast %434 : vector<16x1xf32> to vector<16x32xf32>
    %436 = arith.subf %430, %435 : vector<16x32xf32>
    %437 = arith.mulf %436, %436 : vector<16x32xf32>
    %cst_173 = arith.constant dense<0.000000e+00> : vector<16xf32>
    %438 = vector.multi_reduction <add>, %437, %cst_173 [1] : vector<16x32xf32> to vector<16xf32>
    %439 = vector.shape_cast %438 : vector<16xf32> to vector<16x1xf32>
    %cst_174 = arith.constant 3.200000e+01 : f32
    %440 = vector.broadcast %cst_174 : f32 to vector<16x1xf32>
    %441 = arith.divf %439, %440 : vector<16x1xf32>
    %cst_175 = arith.constant 9.99999996E-13 : f32
    %442 = vector.broadcast %cst_175 : f32 to vector<16x1xf32>
    %443 = arith.addf %441, %442 : vector<16x1xf32>
    %444 = math.rsqrt %443 : vector<16x1xf32>
    %445 = vector.broadcast %444 : vector<16x1xf32> to vector<16x32xf32>
    %446 = arith.mulf %436, %445 : vector<16x32xf32>
    %447 = vector.broadcast %234 : vector<1x32xf32> to vector<16x32xf32>
    %448 = arith.mulf %446, %447 : vector<16x32xf32>
    %449 = vector.broadcast %235 : vector<1x32xf32> to vector<16x32xf32>
    %450 = arith.addf %448, %449 : vector<16x32xf32>
    %c0_176 = arith.constant 0 : index
    %c0_177 = arith.constant 0 : index
    %451 = vector.load %arg7[%c0_176, %c0_177] : memref<16x32xf32, #tpu.memory_space<vmem>>, vector<16x32xf32>
    tpu.vector_store %arg7[%c0_176, %c0_177], %450 {strides = array<i32>} : memref<16x32xf32, #tpu.memory_space<vmem>>, vector<16x32xf32>,
    return
  }
  func.func @transform_0(%arg0: i32) -> (i32, i32) {
    %c0_i32 = arith.constant 0 : i32
    %c0_i32_0 = arith.constant 0 : i32
    %c0_i32_1 = arith.constant 0 : i32
    return %c0_i32, %c0_i32_0 : i32, i32
  }
  func.func @transform_1(%arg0: i32) -> (i32, i32, i32) {
    %c0_i32 = arith.constant 0 : i32
    %c0_i32_0 = arith.constant 0 : i32
    %c0_i32_1 = arith.constant 0 : i32
    %c0_i32_2 = arith.constant 0 : i32
    return %c0_i32, %c0_i32_0, %c0_i32_1 : i32, i32, i32
  }
  func.func @transform_2(%arg0: i32) -> (i32, i32, i32) {
    %c0_i32 = arith.constant 0 : i32
    %c0_i32_0 = arith.constant 0 : i32
    %c0_i32_1 = arith.constant 0 : i32
    %c0_i32_2 = arith.constant 0 : i32
    return %c0_i32, %c0_i32_0, %c0_i32_1 : i32, i32, i32
  }
  func.func @transform_3(%arg0: i32) -> (i32, i32, i32) {
    %c0_i32 = arith.constant 0 : i32
    %c0_i32_0 = arith.constant 0 : i32
    %c0_i32_1 = arith.constant 0 : i32
    %c0_i32_2 = arith.constant 0 : i32
    return %c0_i32, %c0_i32_0, %c0_i32_1 : i32, i32, i32
  }
  func.func @transform_4(%arg0: i32) -> (i32, i32, i32) {
    %c0_i32 = arith.constant 0 : i32
    %c0_i32_0 = arith.constant 0 : i32
    %c0_i32_1 = arith.constant 0 : i32
    %c0_i32_2 = arith.constant 0 : i32
    return %c0_i32, %c0_i32_0, %c0_i32_1 : i32, i32, i32
  }
  func.func @transform_5(%arg0: i32) -> (i32, i32, i32) {
    %c0_i32 = arith.constant 0 : i32
    %c0_i32_0 = arith.constant 0 : i32
    %c0_i32_1 = arith.constant 0 : i32
    %c0_i32_2 = arith.constant 0 : i32
    return %c0_i32, %c0_i32_0, %c0_i32_1 : i32, i32, i32
  }
  func.func @transform_6(%arg0: i32) -> (i32, i32) {
    %c0_i32 = arith.constant 0 : i32
    %c0_i32_0 = arith.constant 0 : i32
    %c0_i32_1 = arith.constant 0 : i32
    return %c0_i32, %c0_i32_0 : i32, i32
  }
}

</mosaic_0001>

<llo_original>
// kernel: bert_model.1
$region0: #{bert_model.1}
  #allocation0 [shape = 'u32[]', space=smem, size = 0x4, offset = 0x4, fixed_abs, tag = 'smem constant byte address 0x4 - core index']
  #allocation1 [shape = 'u32[72,128]{1,0:T(1,128)}', space=vmem, size = 0x9000, scoped, tag = 'internal scratch']
  #allocation2 [shape = 'f32[16,32]{1,0:T(8,128)}', space=vmem, size = 0x2000, scoped, tag = 'scratch operand']
  %s0 = inlined_call_operand.hbm [shape: f32[16,32], index: 0, kind: input, shape index: {}]
  %s1 = inlined_call_operand.vmem [shape: f32[2,32,96], index: 1, kind: input, shape index: {}]
  %s2 = inlined_call_operand.vmem [shape: f32[2,32,32], index: 2, kind: input, shape index: {}]
  %s3 = inlined_call_operand.vmem [shape: f32[2,32,64], index: 3, kind: input, shape index: {}]
  %s4 = inlined_call_operand.vmem [shape: f32[2,64,32], index: 4, kind: input, shape index: {}]
  %s5 = inlined_call_operand.hbm [shape: f32[2,8,96], index: 5, kind: input, shape index: {}]
  %s6 = inlined_call_operand.vmem [shape: f32[16,32], index: 6, kind: output, shape index: {}]
  %s7 = sld [smem:[#allocation0]]
  $region42: #{bert_model.1} parent=0
    _
  %s9 = ssub.s32 1, %s7
  %s10 = scalar_select 0, %s9, %s7
  $region1: #{bert_model.1} parent=0
    #allocation3 [shape = 'u8[8192]{0}', space=vmem, size = 0x2000, scoped, tag = 'input window, operand 0, single buffered']
    #allocation4 [shape = 's32[1]{0}', space=sflag, size = 0x4, scoped, tag = 'scoped memory for bert_model.1']
    #allocation5 [shape = 'u8[8192]{0}', space=vmem, size = 0x2000, scoped, tag = 'input window, operand 5, single buffered']
    #allocation6 [shape = 's32[1]{0}', space=sflag, size = 0x4, scoped, tag = 'scoped memory for bert_model.1']
    %11 = vsyncpa [#allocation4], 0
    %12 = vsyncpa [#allocation6], 0
    // Predicated region
    $region2: #{bert_model.1} parent=1 // pred_check
      _
    $region3: #{bert_model.1} parent=1 // pred_check_branch
      %14 = sbr.rel (0) target = $region5
    $region4: #{bert_model.1} parent=1 // pred_region
      %16 = vsyncadd [#allocation4], 0
      %s17 = sshll.u32 %s0, 4
      %s18 = int_to_ptr.hbm [resolvable:$true] %s17
      %s19 = sshll.u32 [#allocation3], 4
      %s20 = int_to_ptr.vmem [resolvable:$true] %s19
      %25 = dma.hbm_to_vmem [thread:$0]  %s18, 256, %s20, [#allocation4], 128, 128, 8
    $region5: #{bert_model.1} parent=1 // pred_fallthru
      _
    // Predicated region
    $region6: #{bert_model.1} parent=1 // pred_check
      _
    $region7: #{bert_model.1} parent=1 // pred_check_branch
      %27 = sbr.rel (0) target = $region9
    $region8: #{bert_model.1} parent=1 // pred_region
      _
    $region9: #{bert_model.1} parent=1 // pred_fallthru
      _
    // Predicated region
    $region10: #{bert_model.1} parent=1 // pred_check
      _
    $region11: #{bert_model.1} parent=1 // pred_check_branch
      %29 = sbr.rel (0) target = $region13
    $region12: #{bert_model.1} parent=1 // pred_region
      _
    $region13: #{bert_model.1} parent=1 // pred_fallthru
      _
    // Predicated region
    $region14: #{bert_model.1} parent=1 // pred_check
      _
    $region15: #{bert_model.1} parent=1 // pred_check_branch
      %31 = sbr.rel (0) target = $region17
    $region16: #{bert_model.1} parent=1 // pred_region
      _
    $region17: #{bert_model.1} parent=1 // pred_fallthru
      _
    // Predicated region
    $region18: #{bert_model.1} parent=1 // pred_check
      _
    $region19: #{bert_model.1} parent=1 // pred_check_branch
      %33 = sbr.rel (0) target = $region21
    $region20: #{bert_model.1} parent=1 // pred_region
      _
    $region21: #{bert_model.1} parent=1 // pred_fallthru
      _
    // Predicated region
    $region22: #{bert_model.1} parent=1 // pred_check
      _
    $region23: #{bert_model.1} parent=1 // pred_check_branch
      %35 = sbr.rel (0) target = $region25
    $region24: #{bert_model.1} parent=1 // pred_region
      %37 = vsyncadd [#allocation6], 0
      %s38 = sshll.u32 %s5, 4
      %s39 = int_to_ptr.hbm [resolvable:$true] %s38
      %s40 = sshll.u32 [#allocation5], 4
      %s41 = int_to_ptr.vmem [resolvable:$true] %s40
      %46 = dma.hbm_to_vmem [thread:$0]  %s39, 256, %s41, [#allocation6], 128, 128, 8
    $region25: #{bert_model.1} parent=1 // pred_fallthru
      _
    // Predicated region
    $region26: #{bert_model.1} parent=1 // pred_check
      _
    $region27: #{bert_model.1} parent=1 // pred_check_branch
      %48 = sbr.rel (0) target = $region29
    $region28: #{bert_model.1} parent=1 // pred_region
      %50 = dma.done [#allocation4], 256
    $region29: #{bert_model.1} parent=1 // pred_fallthru
      _
    // Predicated region
    $region30: #{bert_model.1} parent=1 // pred_check
      _
    $region31: #{bert_model.1} parent=1 // pred_check_branch
      %52 = sbr.rel (0) target = $region33
    $region32: #{bert_model.1} parent=1 // pred_region
      %54 = dma.done [#allocation6], 256
    $region33: #{bert_model.1} parent=1 // pred_fallthru
      _
    %v55 = vld [vmem:[#allocation3] sm:$0xff]
    %v56 = vld [vmem:[#allocation3 + $0x8] sm:$0xff]
    %v57 = vld [vmem:[#allocation5] sm:$0xff]
    %v58 = vld [vmem:[%s1] sm:$0xff]
    %v59 = vld [vmem:[%s1 + $0x8] sm:$0xff]
    %v60 = vld [vmem:[%s1 + $0x10] sm:$0xff]
    %v61 = vld [vmem:[%s1 + $0x18] sm:$0xff]
    %v62 = vperm.slane %v57, 0
    %vm63 = vcmask 261120
    %v65 = vsel %vm63, %v55, 0
    %v68 = vsel %vm63, %v56, 0
    %70 = vmatpush.msra.mxu0 0.0
    %71 = vmatpush.msra.mxu0 0.0
    %72 = vmatpush.msra.mxu0 0.0
    %73 = vmatpush.msra.mxu0 0.0
    %74 = vmatpush.msra.mxu0 0.0
    %75 = vmatpush.msra.mxu0 0.0
    %76 = vmatpush.msra.mxu0 0.0
    %77 = vmatpush.msra.mxu0 0.0
    %78 = vmatpush.msra.mxu0 0.0
    %79 = vmatpush.msra.mxu0 0.0
    %80 = vmatpush.msra.mxu0 0.0
    %81 = vmatpush.msra.mxu0 0.0
    %82 = vmatpush.msra.mxu0 %v61
    %83 = vmatpush.msra.mxu0 %v60
    %84 = vmatpush.msra.mxu0 %v59
    %85 = vmatpush.msra.mxu0 %v58
    %86 = vmatmul.f32.gmra.mxu0 %v65
    %v87 = vpop.f32.mrf.mxu0
    %v88 = vadd.f32 %v62, %v87
    %89 = vmatmul.f32.gmra.mxu0 %v68
    %v90 = vpop.f32.mrf.mxu0
    %v91 = vadd.f32 %v62, %v90
    %92 = vdwg.mxu0
    %94 = vrot.lane.b32.xlu0 %v88, 96
    %v95 = vpop.permute.xlu0 %94
    %vm96 = vcmask 64512
    %v97 = vsel %vm96, %v88, 0
    %v99 = vsel %vm96, %v95, 0
    %101 = vmatpush.xpose.msra.mxu0 0.0
    %102 = vmatpush.xpose.msra.mxu0 0.0
    %103 = vmatpush.xpose.msra.mxu0 0.0
    %104 = vmatpush.xpose.msra.mxu0 0.0
    %105 = vmatpush.xpose.msra.mxu0 0.0
    %106 = vmatpush.xpose.msra.mxu0 0.0
    %107 = vmatpush.xpose.msra.mxu0 0.0
    %108 = vmatpush.xpose.msra.mxu0 0.0
    %109 = vmatpush.xpose.msra.mxu0 0.0
    %110 = vmatpush.xpose.msra.mxu0 0.0
    %111 = vmatpush.xpose.msra.mxu0 0.0
    %112 = vmatpush.xpose.msra.mxu0 0.0
    %113 = vmatpush.xpose.msra.mxu0 0.0
    %114 = vmatpush.xpose.msra.mxu0 0.0
    %115 = vmatpush.xpose.msra.mxu0 0.0
    %116 = vmatpush.xpose.msra.mxu0 %v99
    %117 = vmatmul.f32.gmra.mxu0 %v97
    %v118 = vpop.f32.mrf.mxu0
    %v119 = vadd.f32 0.0, %v118
    %120 = vdwg.mxu0
    %v121 = vmul.f32 %v119, 0.35355338
    %v122 = vsel %vm96, %v121, -inf
    %123 = vmax.xlane.f32.xlu0 %v122
    %v124 = vpop.xlane.xlu0 %123
    %v125 = vsub.f32 %v121, %v124
    %v126 = vmul.f32 %v125, 1.442695
    %v127 = vpow.pop %v126
    %v128 = vsel %vm96, %v127, 0.0
    %129 = vadd.xlane.f32.xlu0 %v128
    %v130 = vpop.xlane.xlu0 %129
    %v131 = vrcp.pop %v130
    %v132 = vmul.f32 %v127, %v131
    %133 = vrot.lane.b32.xlu0 %v88, 64
    %v134 = vpop.permute.xlu0 %133
    %v137 = vsel %vm96, %v132, 0
    %139 = vmatpush.msra.mxu0 0.0
    %140 = vmatpush.msra.mxu0 0.0
    %141 = vmatpush.msra.mxu0 0.0
    %142 = vmatpush.msra.mxu0 0.0
    %143 = vmatpush.msra.mxu0 0.0
    %144 = vmatpush.msra.mxu0 0.0
    %145 = vmatpush.msra.mxu0 0.0
    %146 = vmatpush.msra.mxu0 0.0
    %147 = vmatpush.msra.mxu0 0.0
    %148 = vmatpush.msra.mxu0 0.0
    %149 = vmatpush.msra.mxu0 0.0
    %150 = vmatpush.msra.mxu0 0.0
    %151 = vmatpush.msra.mxu0 0.0
    %152 = vmatpush.msra.mxu0 0.0
    %153 = vmatpush.msra.mxu0 0.0
    %154 = vmatpush.msra.mxu0 %v134
    %155 = vmatmul.f32.gmra.mxu0 %v137
    %v156 = vpop.f32.mrf.mxu0
    %v157 = vadd.f32 0.0, %v156
    %158 = vdwg.mxu0
    %159 = vst.msk [vmem:[#allocation2] sm:$0xff] %vm96, %v157
    %160 = vrot.lane.b32.xlu0 %v88, 120
    %v161 = vpop.permute.xlu0 %160
    %162 = vrot.lane.b32.xlu0 %v88, 88
    %v163 = vpop.permute.xlu0 %162
    %v164 = vsel %vm96, %v161, 0
    %v166 = vsel %vm96, %v163, 0
    %168 = vmatpush.xpose.msra.mxu0 0.0
    %169 = vmatpush.xpose.msra.mxu0 0.0
    %170 = vmatpush.xpose.msra.mxu0 0.0
    %171 = vmatpush.xpose.msra.mxu0 0.0
    %172 = vmatpush.xpose.msra.mxu0 0.0
    %173 = vmatpush.xpose.msra.mxu0 0.0
    %174 = vmatpush.xpose.msra.mxu0 0.0
    %175 = vmatpush.xpose.msra.mxu0 0.0
    %176 = vmatpush.xpose.msra.mxu0 0.0
    %177 = vmatpush.xpose.msra.mxu0 0.0
    %178 = vmatpush.xpose.msra.mxu0 0.0
    %179 = vmatpush.xpose.msra.mxu0 0.0
    %180 = vmatpush.xpose.msra.mxu0 0.0
    %181 = vmatpush.xpose.msra.mxu0 0.0
    %182 = vmatpush.xpose.msra.mxu0 0.0
    %183 = vmatpush.xpose.msra.mxu0 %v166
    %184 = vmatmul.f32.gmra.mxu0 %v164
    %v185 = vpop.f32.mrf.mxu0
    %v186 = vadd.f32 0.0, %v185
    %187 = vdwg.mxu0
    %v188 = vmul.f32 %v186, 0.35355338
    %v189 = vsel %vm96, %v188, -inf
    %190 = vmax.xlane.f32.xlu0 %v189
    %v191 = vpop.xlane.xlu0 %190
    %v192 = vsub.f32 %v188, %v191
    %v193 = vmul.f32 %v192, 1.442695
    %v194 = vpow.pop %v193
    %v195 = vsel %vm96, %v194, 0.0
    %196 = vadd.xlane.f32.xlu0 %v195
    %v197 = vpop.xlane.xlu0 %196
    %v198 = vrcp.pop %v197
    %v199 = vmul.f32 %v194, %v198
    %200 = vrot.lane.b32.xlu0 %v88, 56
    %v201 = vpop.permute.xlu0 %200
    %v204 = vsel %vm96, %v199, 0
    %206 = vmatpush.msra.mxu0 0.0
    %207 = vmatpush.msra.mxu0 0.0
    %208 = vmatpush.msra.mxu0 0.0
    %209 = vmatpush.msra.mxu0 0.0
    %210 = vmatpush.msra.mxu0 0.0
    %211 = vmatpush.msra.mxu0 0.0
    %212 = vmatpush.msra.mxu0 0.0
    %213 = vmatpush.msra.mxu0 0.0
    %214 = vmatpush.msra.mxu0 0.0
    %215 = vmatpush.msra.mxu0 0.0
    %216 = vmatpush.msra.mxu0 0.0
    %217 = vmatpush.msra.mxu0 0.0
    %218 = vmatpush.msra.mxu0 0.0
    %219 = vmatpush.msra.mxu0 0.0
    %220 = vmatpush.msra.mxu0 0.0
    %221 = vmatpush.msra.mxu0 %v201
    %222 = vmatmul.f32.gmra.mxu0 %v204
    %v223 = vpop.f32.mrf.mxu0
    %v224 = vadd.f32 0.0, %v223
    %225 = vdwg.mxu0
    %227 = vrot.lane.b32.xlu0 %v224, 8
    %v228 = vpop.permute.xlu0 %227
    %vm230 = vcmask 130112
    %231 = vst.msk [vmem:[#allocation2] sm:$0xff] %vm230, %v228
    %232 = vrot.lane.b32.xlu0 %v88, 112
    %v233 = vpop.permute.xlu0 %232
    %234 = vrot.lane.b32.xlu0 %v88, 80
    %v235 = vpop.permute.xlu0 %234
    %v236 = vsel %vm96, %v233, 0
    %v238 = vsel %vm96, %v235, 0
    %240 = vmatpush.xpose.msra.mxu0 0.0
    %241 = vmatpush.xpose.msra.mxu0 0.0
    %242 = vmatpush.xpose.msra.mxu0 0.0
    %243 = vmatpush.xpose.msra.mxu0 0.0
    %244 = vmatpush.xpose.msra.mxu0 0.0
    %245 = vmatpush.xpose.msra.mxu0 0.0
    %246 = vmatpush.xpose.msra.mxu0 0.0
    %247 = vmatpush.xpose.msra.mxu0 0.0
    %248 = vmatpush.xpose.msra.mxu0 0.0
    %249 = vmatpush.xpose.msra.mxu0 0.0
    %250 = vmatpush.xpose.msra.mxu0 0.0
    %251 = vmatpush.xpose.msra.mxu0 0.0
    %252 = vmatpush.xpose.msra.mxu0 0.0
    %253 = vmatpush.xpose.msra.mxu0 0.0
    %254 = vmatpush.xpose.msra.mxu0 0.0
    %255 = vmatpush.xpose.msra.mxu0 %v238
    %256 = vmatmul.f32.gmra.mxu0 %v236
    %v257 = vpop.f32.mrf.mxu0
    %v258 = vadd.f32 0.0, %v257
    %259 = vdwg.mxu0
    %v260 = vmul.f32 %v258, 0.35355338
    %v261 = vsel %vm96, %v260, -inf
    %262 = vmax.xlane.f32.xlu0 %v261
    %v263 = vpop.xlane.xlu0 %262
    %v264 = vsub.f32 %v260, %v263
    %v265 = vmul.f32 %v264, 1.442695
    %v266 = vpow.pop %v265
    %v267 = vsel %vm96, %v266, 0.0
    %268 = vadd.xlane.f32.xlu0 %v267
    %v269 = vpop.xlane.xlu0 %268
    %v270 = vrcp.pop %v269
    %v271 = vmul.f32 %v266, %v270
    %272 = vrot.lane.b32.xlu0 %v88, 48
    %v273 = vpop.permute.xlu0 %272
    %v276 = vsel %vm96, %v271, 0
    %278 = vmatpush.msra.mxu0 0.0
    %279 = vmatpush.msra.mxu0 0.0
    %280 = vmatpush.msra.mxu0 0.0
    %281 = vmatpush.msra.mxu0 0.0
    %282 = vmatpush.msra.mxu0 0.0
    %283 = vmatpush.msra.mxu0 0.0
    %284 = vmatpush.msra.mxu0 0.0
    %285 = vmatpush.msra.mxu0 0.0
    %286 = vmatpush.msra.mxu0 0.0
    %287 = vmatpush.msra.mxu0 0.0
    %288 = vmatpush.msra.mxu0 0.0
    %289 = vmatpush.msra.mxu0 0.0
    %290 = vmatpush.msra.mxu0 0.0
    %291 = vmatpush.msra.mxu0 0.0
    %292 = vmatpush.msra.mxu0 0.0
    %293 = vmatpush.msra.mxu0 %v273
    %294 = vmatmul.f32.gmra.mxu0 %v276
    %v295 = vpop.f32.mrf.mxu0
    %v296 = vadd.f32 0.0, %v295
    %297 = vdwg.mxu0
    %299 = vrot.lane.b32.xlu0 %v296, 16
    %v300 = vpop.permute.xlu0 %299
    %vm302 = vcmask 195712
    %303 = vst.msk [vmem:[#allocation2] sm:$0xff] %vm302, %v300
    %304 = vrot.lane.b32.xlu0 %v88, 104
    %v305 = vpop.permute.xlu0 %304
    %306 = vrot.lane.b32.xlu0 %v88, 72
    %v307 = vpop.permute.xlu0 %306
    %v308 = vsel %vm96, %v305, 0
    %v310 = vsel %vm96, %v307, 0
    %312 = vmatpush.xpose.msra.mxu0 0.0
    %313 = vmatpush.xpose.msra.mxu0 0.0
    %314 = vmatpush.xpose.msra.mxu0 0.0
    %315 = vmatpush.xpose.msra.mxu0 0.0
    %316 = vmatpush.xpose.msra.mxu0 0.0
    %317 = vmatpush.xpose.msra.mxu0 0.0
    %318 = vmatpush.xpose.msra.mxu0 0.0
    %319 = vmatpush.xpose.msra.mxu0 0.0
    %320 = vmatpush.xpose.msra.mxu0 0.0
    %321 = vmatpush.xpose.msra.mxu0 0.0
    %322 = vmatpush.xpose.msra.mxu0 0.0
    %323 = vmatpush.xpose.msra.mxu0 0.0
    %324 = vmatpush.xpose.msra.mxu0 0.0
    %325 = vmatpush.xpose.msra.mxu0 0.0
    %326 = vmatpush.xpose.msra.mxu0 0.0
    %327 = vmatpush.xpose.msra.mxu0 %v310
    %328 = vmatmul.f32.gmra.mxu0 %v308
    %v329 = vpop.f32.mrf.mxu0
    %v330 = vadd.f32 0.0, %v329
    %331 = vdwg.mxu0
    %v332 = vmul.f32 %v330, 0.35355338
    %v333 = vsel %vm96, %v332, -inf
    %334 = vmax.xlane.f32.xlu0 %v333
    %v335 = vpop.xlane.xlu0 %334
    %v336 = vsub.f32 %v332, %v335
    %v337 = vmul.f32 %v336, 1.442695
    %v338 = vpow.pop %v337
    %v339 = vsel %vm96, %v338, 0.0
    %340 = vadd.xlane.f32.xlu0 %v339
    %v341 = vpop.xlane.xlu0 %340
    %v342 = vrcp.pop %v341
    %v343 = vmul.f32 %v338, %v342
    %344 = vrot.lane.b32.xlu0 %v88, 40
    %v345 = vpop.permute.xlu0 %344
    %v348 = vsel %vm96, %v343, 0
    %350 = vmatpush.msra.mxu0 0.0
    %351 = vmatpush.msra.mxu0 0.0
    %352 = vmatpush.msra.mxu0 0.0
    %353 = vmatpush.msra.mxu0 0.0
    %354 = vmatpush.msra.mxu0 0.0
    %355 = vmatpush.msra.mxu0 0.0
    %356 = vmatpush.msra.mxu0 0.0
    %357 = vmatpush.msra.mxu0 0.0
    %358 = vmatpush.msra.mxu0 0.0
    %359 = vmatpush.msra.mxu0 0.0
    %360 = vmatpush.msra.mxu0 0.0
    %361 = vmatpush.msra.mxu0 0.0
    %362 = vmatpush.msra.mxu0 0.0
    %363 = vmatpush.msra.mxu0 0.0
    %364 = vmatpush.msra.mxu0 0.0
    %365 = vmatpush.msra.mxu0 %v345
    %366 = vmatmul.f32.gmra.mxu0 %v348
    %v367 = vpop.f32.mrf.mxu0
    %v368 = vadd.f32 0.0, %v367
    %369 = vdwg.mxu0
    %371 = vrot.lane.b32.xlu0 %v368, 24
    %v372 = vpop.permute.xlu0 %371
    %vm374 = vcmask 261312
    %375 = vst.msk [vmem:[#allocation2] sm:$0xff] %vm374, %v372
    %377 = vrot.lane.b32.xlu0 %v91, 96
    %v378 = vpop.permute.xlu0 %377
    %v379 = vsel %vm96, %v91, 0
    %v381 = vsel %vm96, %v378, 0
    %383 = vmatpush.xpose.msra.mxu0 0.0
    %384 = vmatpush.xpose.msra.mxu0 0.0
    %385 = vmatpush.xpose.msra.mxu0 0.0
    %386 = vmatpush.xpose.msra.mxu0 0.0
    %387 = vmatpush.xpose.msra.mxu0 0.0
    %388 = vmatpush.xpose.msra.mxu0 0.0
    %389 = vmatpush.xpose.msra.mxu0 0.0
    %390 = vmatpush.xpose.msra.mxu0 0.0
    %391 = vmatpush.xpose.msra.mxu0 0.0
    %392 = vmatpush.xpose.msra.mxu0 0.0
    %393 = vmatpush.xpose.msra.mxu0 0.0
    %394 = vmatpush.xpose.msra.mxu0 0.0
    %395 = vmatpush.xpose.msra.mxu0 0.0
    %396 = vmatpush.xpose.msra.mxu0 0.0
    %397 = vmatpush.xpose.msra.mxu0 0.0
    %398 = vmatpush.xpose.msra.mxu0 %v381
    %399 = vmatmul.f32.gmra.mxu0 %v379
    %v400 = vpop.f32.mrf.mxu0
    %v401 = vadd.f32 0.0, %v400
    %402 = vdwg.mxu0
    %v403 = vmul.f32 %v401, 0.35355338
    %v404 = vsel %vm96, %v403, -inf
    %405 = vmax.xlane.f32.xlu0 %v404
    %v406 = vpop.xlane.xlu0 %405
    %v407 = vsub.f32 %v403, %v406
    %v408 = vmul.f32 %v407, 1.442695
    %v409 = vpow.pop %v408
    %v410 = vsel %vm96, %v409, 0.0
    %411 = vadd.xlane.f32.xlu0 %v410
    %v412 = vpop.xlane.xlu0 %411
    %v413 = vrcp.pop %v412
    %v414 = vmul.f32 %v409, %v413
    %415 = vrot.lane.b32.xlu0 %v91, 64
    %v416 = vpop.permute.xlu0 %415
    %v419 = vsel %vm96, %v414, 0
    %421 = vmatpush.msra.mxu0 0.0
    %422 = vmatpush.msra.mxu0 0.0
    %423 = vmatpush.msra.mxu0 0.0
    %424 = vmatpush.msra.mxu0 0.0
    %425 = vmatpush.msra.mxu0 0.0
    %426 = vmatpush.msra.mxu0 0.0
    %427 = vmatpush.msra.mxu0 0.0
    %428 = vmatpush.msra.mxu0 0.0
    %429 = vmatpush.msra.mxu0 0.0
    %430 = vmatpush.msra.mxu0 0.0
    %431 = vmatpush.msra.mxu0 0.0
    %432 = vmatpush.msra.mxu0 0.0
    %433 = vmatpush.msra.mxu0 0.0
    %434 = vmatpush.msra.mxu0 0.0
    %435 = vmatpush.msra.mxu0 0.0
    %436 = vmatpush.msra.mxu0 %v416
    %437 = vmatmul.f32.gmra.mxu0 %v419
    %v438 = vpop.f32.mrf.mxu0
    %v439 = vadd.f32 0.0, %v438
    %440 = vdwg.mxu0
    %441 = vst.msk [vmem:[#allocation2 + $0x8] sm:$0xff] %vm96, %v439
    %442 = vrot.lane.b32.xlu0 %v91, 120
    %v443 = vpop.permute.xlu0 %442
    %444 = vrot.lane.b32.xlu0 %v91, 88
    %v445 = vpop.permute.xlu0 %444
    %v446 = vsel %vm96, %v443, 0
    %v448 = vsel %vm96, %v445, 0
    %450 = vmatpush.xpose.msra.mxu0 0.0
    %451 = vmatpush.xpose.msra.mxu0 0.0
    %452 = vmatpush.xpose.msra.mxu0 0.0
    %453 = vmatpush.xpose.msra.mxu0 0.0
    %454 = vmatpush.xpose.msra.mxu0 0.0
    %455 = vmatpush.xpose.msra.mxu0 0.0
    %456 = vmatpush.xpose.msra.mxu0 0.0
    %457 = vmatpush.xpose.msra.mxu0 0.0
    %458 = vmatpush.xpose.msra.mxu0 0.0
    %459 = vmatpush.xpose.msra.mxu0 0.0
    %460 = vmatpush.xpose.msra.mxu0 0.0
    %461 = vmatpush.xpose.msra.mxu0 0.0
    %462 = vmatpush.xpose.msra.mxu0 0.0
    %463 = vmatpush.xpose.msra.mxu0 0.0
    %464 = vmatpush.xpose.msra.mxu0 0.0
    %465 = vmatpush.xpose.msra.mxu0 %v448
    %466 = vmatmul.f32.gmra.mxu0 %v446
    %v467 = vpop.f32.mrf.mxu0
    %v468 = vadd.f32 0.0, %v467
    %469 = vdwg.mxu0
    %v470 = vmul.f32 %v468, 0.35355338
    %v471 = vsel %vm96, %v470, -inf
    %472 = vmax.xlane.f32.xlu0 %v471
    %v473 = vpop.xlane.xlu0 %472
    %v474 = vsub.f32 %v470, %v473
    %v475 = vmul.f32 %v474, 1.442695
    %v476 = vpow.pop %v475
    %v477 = vsel %vm96, %v476, 0.0
    %478 = vadd.xlane.f32.xlu0 %v477
    %v479 = vpop.xlane.xlu0 %478
    %v480 = vrcp.pop %v479
    %v481 = vmul.f32 %v476, %v480
    %482 = vrot.lane.b32.xlu0 %v91, 56
    %v483 = vpop.permute.xlu0 %482
    %v486 = vsel %vm96, %v481, 0
    %488 = vmatpush.msra.mxu0 0.0
    %489 = vmatpush.msra.mxu0 0.0
    %490 = vmatpush.msra.mxu0 0.0
    %491 = vmatpush.msra.mxu0 0.0
    %492 = vmatpush.msra.mxu0 0.0
    %493 = vmatpush.msra.mxu0 0.0
    %494 = vmatpush.msra.mxu0 0.0
    %495 = vmatpush.msra.mxu0 0.0
    %496 = vmatpush.msra.mxu0 0.0
    %497 = vmatpush.msra.mxu0 0.0
    %498 = vmatpush.msra.mxu0 0.0
    %499 = vmatpush.msra.mxu0 0.0
    %500 = vmatpush.msra.mxu0 0.0
    %501 = vmatpush.msra.mxu0 0.0
    %502 = vmatpush.msra.mxu0 0.0
    %503 = vmatpush.msra.mxu0 %v483
    %504 = vmatmul.f32.gmra.mxu0 %v486
    %v505 = vpop.f32.mrf.mxu0
    %v506 = vadd.f32 0.0, %v505
    %507 = vdwg.mxu0
    %509 = vrot.lane.b32.xlu0 %v506, 8
    %v510 = vpop.permute.xlu0 %509
    %512 = vst.msk [vmem:[#allocation2 + $0x8] sm:$0xff] %vm230, %v510
    %513 = vrot.lane.b32.xlu0 %v91, 112
    %v514 = vpop.permute.xlu0 %513
    %515 = vrot.lane.b32.xlu0 %v91, 80
    %v516 = vpop.permute.xlu0 %515
    %v517 = vsel %vm96, %v514, 0
    %v519 = vsel %vm96, %v516, 0
    %521 = vmatpush.xpose.msra.mxu0 0.0
    %522 = vmatpush.xpose.msra.mxu0 0.0
    %523 = vmatpush.xpose.msra.mxu0 0.0
    %524 = vmatpush.xpose.msra.mxu0 0.0
    %525 = vmatpush.xpose.msra.mxu0 0.0
    %526 = vmatpush.xpose.msra.mxu0 0.0
    %527 = vmatpush.xpose.msra.mxu0 0.0
    %528 = vmatpush.xpose.msra.mxu0 0.0
    %529 = vmatpush.xpose.msra.mxu0 0.0
    %530 = vmatpush.xpose.msra.mxu0 0.0
    %531 = vmatpush.xpose.msra.mxu0 0.0
    %532 = vmatpush.xpose.msra.mxu0 0.0
    %533 = vmatpush.xpose.msra.mxu0 0.0
    %534 = vmatpush.xpose.msra.mxu0 0.0
    %535 = vmatpush.xpose.msra.mxu0 0.0
    %536 = vmatpush.xpose.msra.mxu0 %v519
    %537 = vmatmul.f32.gmra.mxu0 %v517
    %v538 = vpop.f32.mrf.mxu0
    %v539 = vadd.f32 0.0, %v538
    %540 = vdwg.mxu0
    %v541 = vmul.f32 %v539, 0.35355338
    %v542 = vsel %vm96, %v541, -inf
    %543 = vmax.xlane.f32.xlu0 %v542
    %v544 = vpop.xlane.xlu0 %543
    %v545 = vsub.f32 %v541, %v544
    %v546 = vmul.f32 %v545, 1.442695
    %v547 = vpow.pop %v546
    %v548 = vsel %vm96, %v547, 0.0
    %549 = vadd.xlane.f32.xlu0 %v548
    %v550 = vpop.xlane.xlu0 %549
    %v551 = vrcp.pop %v550
    %v552 = vmul.f32 %v547, %v551
    %553 = vrot.lane.b32.xlu0 %v91, 48
    %v554 = vpop.permute.xlu0 %553
    %v557 = vsel %vm96, %v552, 0
    %559 = vmatpush.msra.mxu0 0.0
    %560 = vmatpush.msra.mxu0 0.0
    %561 = vmatpush.msra.mxu0 0.0
    %562 = vmatpush.msra.mxu0 0.0
    %563 = vmatpush.msra.mxu0 0.0
    %564 = vmatpush.msra.mxu0 0.0
    %565 = vmatpush.msra.mxu0 0.0
    %566 = vmatpush.msra.mxu0 0.0
    %567 = vmatpush.msra.mxu0 0.0
    %568 = vmatpush.msra.mxu0 0.0
    %569 = vmatpush.msra.mxu0 0.0
    %570 = vmatpush.msra.mxu0 0.0
    %571 = vmatpush.msra.mxu0 0.0
    %572 = vmatpush.msra.mxu0 0.0
    %573 = vmatpush.msra.mxu0 0.0
    %574 = vmatpush.msra.mxu0 %v554
    %575 = vmatmul.f32.gmra.mxu0 %v557
    %v576 = vpop.f32.mrf.mxu0
    %v577 = vadd.f32 0.0, %v576
    %578 = vdwg.mxu0
    %580 = vrot.lane.b32.xlu0 %v577, 16
    %v581 = vpop.permute.xlu0 %580
    %583 = vst.msk [vmem:[#allocation2 + $0x8] sm:$0xff] %vm302, %v581
    %584 = vrot.lane.b32.xlu0 %v91, 104
    %v585 = vpop.permute.xlu0 %584
    %586 = vrot.lane.b32.xlu0 %v91, 72
    %v587 = vpop.permute.xlu0 %586
    %v588 = vsel %vm96, %v585, 0
    %v590 = vsel %vm96, %v587, 0
    %592 = vmatpush.xpose.msra.mxu0 0.0
    %593 = vmatpush.xpose.msra.mxu0 0.0
    %594 = vmatpush.xpose.msra.mxu0 0.0
    %595 = vmatpush.xpose.msra.mxu0 0.0
    %596 = vmatpush.xpose.msra.mxu0 0.0
    %597 = vmatpush.xpose.msra.mxu0 0.0
    %598 = vmatpush.xpose.msra.mxu0 0.0
    %599 = vmatpush.xpose.msra.mxu0 0.0
    %600 = vmatpush.xpose.msra.mxu0 0.0
    %601 = vmatpush.xpose.msra.mxu0 0.0
    %602 = vmatpush.xpose.msra.mxu0 0.0
    %603 = vmatpush.xpose.msra.mxu0 0.0
    %604 = vmatpush.xpose.msra.mxu0 0.0
    %605 = vmatpush.xpose.msra.mxu0 0.0
    %606 = vmatpush.xpose.msra.mxu0 0.0
    %607 = vmatpush.xpose.msra.mxu0 %v590
    %608 = vmatmul.f32.gmra.mxu0 %v588
    %v609 = vpop.f32.mrf.mxu0
    %v610 = vadd.f32 0.0, %v609
    %611 = vdwg.mxu0
    %v612 = vmul.f32 %v610, 0.35355338
    %v613 = vsel %vm96, %v612, -inf
    %614 = vmax.xlane.f32.xlu0 %v613
    %v615 = vpop.xlane.xlu0 %614
    %v616 = vsub.f32 %v612, %v615
    %v617 = vmul.f32 %v616, 1.442695
    %v618 = vpow.pop %v617
    %v619 = vsel %vm96, %v618, 0.0
    %620 = vadd.xlane.f32.xlu0 %v619
    %v621 = vpop.xlane.xlu0 %620
    %v622 = vrcp.pop %v621
    %v623 = vmul.f32 %v618, %v622
    %624 = vrot.lane.b32.xlu0 %v91, 40
    %v625 = vpop.permute.xlu0 %624
    %v628 = vsel %vm96, %v623, 0
    %630 = vmatpush.msra.mxu0 0.0
    %631 = vmatpush.msra.mxu0 0.0
    %632 = vmatpush.msra.mxu0 0.0
    %633 = vmatpush.msra.mxu0 0.0
    %634 = vmatpush.msra.mxu0 0.0
    %635 = vmatpush.msra.mxu0 0.0
    %636 = vmatpush.msra.mxu0 0.0
    %637 = vmatpush.msra.mxu0 0.0
    %638 = vmatpush.msra.mxu0 0.0
    %639 = vmatpush.msra.mxu0 0.0
    %640 = vmatpush.msra.mxu0 0.0
    %641 = vmatpush.msra.mxu0 0.0
    %642 = vmatpush.msra.mxu0 0.0
    %643 = vmatpush.msra.mxu0 0.0
    %644 = vmatpush.msra.mxu0 0.0
    %645 = vmatpush.msra.mxu0 %v625
    %646 = vmatmul.f32.gmra.mxu0 %v628
    %v647 = vpop.f32.mrf.mxu0
    %v648 = vadd.f32 0.0, %v647
    %649 = vdwg.mxu0
    %651 = vrot.lane.b32.xlu0 %v648, 24
    %v652 = vpop.permute.xlu0 %651
    %654 = vst.msk [vmem:[#allocation2 + $0x8] sm:$0xff] %vm374, %v652
    %v655 = vld [vmem:[#allocation2] sm:$0xff]
    %v656 = vld [vmem:[#allocation2 + $0x8] sm:$0xff]
    %v657 = vld [vmem:[%s2] sm:$0xff]
    %v658 = vld [vmem:[%s2 + $0x8] sm:$0xff]
    %v659 = vld [vmem:[%s2 + $0x10] sm:$0xff]
    %v660 = vld [vmem:[%s2 + $0x18] sm:$0xff]
    %v661 = vperm.slane %v57, 2
    %v663 = vsel %vm63, %v655, 0
    %v666 = vsel %vm63, %v656, 0
    %668 = vmatpush.msra.mxu0 0.0
    %669 = vmatpush.msra.mxu0 0.0
    %670 = vmatpush.msra.mxu0 0.0
    %671 = vmatpush.msra.mxu0 0.0
    %672 = vmatpush.msra.mxu0 0.0
    %673 = vmatpush.msra.mxu0 0.0
    %674 = vmatpush.msra.mxu0 0.0
    %675 = vmatpush.msra.mxu0 0.0
    %676 = vmatpush.msra.mxu0 0.0
    %677 = vmatpush.msra.mxu0 0.0
    %678 = vmatpush.msra.mxu0 0.0
    %679 = vmatpush.msra.mxu0 0.0
    %680 = vmatpush.msra.mxu0 %v660
    %681 = vmatpush.msra.mxu0 %v659
    %682 = vmatpush.msra.mxu0 %v658
    %683 = vmatpush.msra.mxu0 %v657
    %684 = vmatmul.f32.gmra.mxu0 %v663
    %v685 = vpop.f32.mrf.mxu0
    %v686 = vadd.f32 %v661, %v685
    %687 = vmatmul.f32.gmra.mxu0 %v666
    %v688 = vpop.f32.mrf.mxu0
    %v689 = vadd.f32 %v661, %v688
    %690 = vdwg.mxu0
    %v691 = vadd.f32 %v686, %v55
    %v692 = vadd.f32 %v689, %v56
    %v693 = vsel %vm63, %v691, 0.0
    %694 = vadd.xlane.f32.xlu0 %v693
    %v695 = vpop.xlane.xlu0 %694
    %v696 = vsel %vm63, %v692, 0.0
    %697 = vadd.xlane.f32.xlu0 %v696
    %v698 = vpop.xlane.xlu0 %697
    %v699 = vrcp.pop 32.0
    %v700 = vmul.f32 32.0, %v699
    %v701 = vsub.f32 1.0, %v700
    %v702 = vmul.f32 %v699, %v701
    %v703 = vadd.f32 %v699, %v702
    %vm704 = vweird.f32 %v699
    %v705 = vsel %vm704, %v699, %v703
    %v706 = vmul.f32 %v695, %v705
    %v707 = vmul.f32 %v698, %v705
    %v708 = vsub.f32 %v691, %v706
    %v709 = vsub.f32 %v692, %v707
    %v710 = vmul.f32 %v708, %v708
    %v711 = vmul.f32 %v709, %v709
    %v712 = vsel %vm63, %v710, 0.0
    %713 = vadd.xlane.f32.xlu0 %v712
    %v714 = vpop.xlane.xlu0 %713
    %v715 = vsel %vm63, %v711, 0.0
    %716 = vadd.xlane.f32.xlu0 %v715
    %v717 = vpop.xlane.xlu0 %716
    %v718 = vmul.f32 %v714, %v705
    %v719 = vmul.f32 %v717, %v705
    %v720 = vadd.f32 %v718, 1e-12
    %v721 = vadd.f32 %v719, 1e-12
    %v722 = vrsqrt.pop %v720
    %v723 = vmul.f32 %v722, %v720
    %v724 = vmul.f32 %v723, %v722
    %v725 = vmul.f32 0.5, %v724
    %v726 = vsub.f32 1.5, %v725
    %v727 = vmul.f32 %v722, %v726
    %vm728 = vweird.f32 %v720
    %vm729 = vweird.f32 %v722
    %vm730 = vmor %vm728, %vm729
    %v731 = vsel %vm730, %v722, %v727
    %v732 = vrsqrt.pop %v721
    %v733 = vmul.f32 %v732, %v721
    %v734 = vmul.f32 %v733, %v732
    %v735 = vmul.f32 0.5, %v734
    %v736 = vsub.f32 1.5, %v735
    %v737 = vmul.f32 %v732, %v736
    %vm738 = vweird.f32 %v721
    %vm739 = vweird.f32 %v732
    %vm740 = vmor %vm738, %vm739
    %v741 = vsel %vm740, %v732, %v737
    %v742 = vmul.f32 %v708, %v731
    %v743 = vmul.f32 %v709, %v741
    %v744 = vperm.slane %v57, 3
    %v745 = vmul.f32 %v742, %v744
    %v746 = vmul.f32 %v743, %v744
    %v747 = vperm.slane %v57, 4
    %v748 = vadd.f32 %v745, %v747
    %v749 = vadd.f32 %v746, %v747
    %v750 = vld [vmem:[%s3] sm:$0xff]
    %v751 = vld [vmem:[%s3 + $0x8] sm:$0xff]
    %v752 = vld [vmem:[%s3 + $0x10] sm:$0xff]
    %v753 = vld [vmem:[%s3 + $0x18] sm:$0xff]
    %v754 = vperm.slane %v57, 1
    %v756 = vsel %vm63, %v748, 0
    %v759 = vsel %vm63, %v749, 0
    %761 = vmatpush.msra.mxu0 0.0
    %762 = vmatpush.msra.mxu0 0.0
    %763 = vmatpush.msra.mxu0 0.0
    %764 = vmatpush.msra.mxu0 0.0
    %765 = vmatpush.msra.mxu0 0.0
    %766 = vmatpush.msra.mxu0 0.0
    %767 = vmatpush.msra.mxu0 0.0
    %768 = vmatpush.msra.mxu0 0.0
    %769 = vmatpush.msra.mxu0 0.0
    %770 = vmatpush.msra.mxu0 0.0
    %771 = vmatpush.msra.mxu0 0.0
    %772 = vmatpush.msra.mxu0 0.0
    %773 = vmatpush.msra.mxu0 %v753
    %774 = vmatpush.msra.mxu0 %v752
    %775 = vmatpush.msra.mxu0 %v751
    %776 = vmatpush.msra.mxu0 %v750
    %777 = vmatmul.f32.gmra.mxu0 %v756
    %v778 = vpop.f32.mrf.mxu0
    %v779 = vadd.f32 %v754, %v778
    %780 = vmatmul.f32.gmra.mxu0 %v759
    %v781 = vpop.f32.mrf.mxu0
    %v782 = vadd.f32 %v754, %v781
    %783 = vdwg.mxu0
    %v784 = vmul.f32 %v779, 0.5
    %v785 = vmul.f32 %v782, 0.5
    %v786 = vmul.f32 %v779, 0.70710677
    %v787 = vmul.f32 %v782, 0.70710677
    %v788 = vmul.f32 %v786, %v786
    %v789 = vmin.f32 16.0, %v788
    %v790 = vmul.f32 %v789, 2.1237322e-06
    %v791 = vadd.f32 %v790, 0.00028619796
    %v792 = vmul.f32 %v789, %v791
    %v793 = vadd.f32 %v792, 0.0036580483
    %v794 = vmul.f32 %v789, %v793
    %v795 = vadd.f32 %v794, 0.05243302
    %v796 = vmul.f32 %v789, %v795
    %v797 = vadd.f32 %v796, 0.18741608
    %v798 = vmul.f32 %v789, %v797
    %v799 = vadd.f32 %v798, 1.1283791
    %v800 = vmul.f32 %v786, %v799
    %v801 = vmul.f32 %v789, 3.8918573e-05
    %v802 = vadd.f32 %v801, 0.001143296
    %v803 = vmul.f32 %v789, %v802
    %v804 = vadd.f32 %v803, 0.014752088
    %v805 = vmul.f32 %v789, %v804
    %v806 = vadd.f32 %v805, 0.112945676
    %v807 = vmul.f32 %v789, %v806
    %v808 = vadd.f32 %v807, 0.4994258
    %v809 = vmul.f32 %v789, %v808
    %v810 = vadd.f32 %v809, 1.0
    %v811 = vrcp.pop %v810
    %v812 = vmul.f32 %v810, %v811
    %v813 = vsub.f32 1.0, %v812
    %v814 = vmul.f32 %v811, %v813
    %v815 = vadd.f32 %v811, %v814
    %vm816 = vweird.f32 %v810
    %vm817 = vweird.f32 %v811
    %vm818 = vmor %vm816, %vm817
    %v819 = vsel %vm818, %v811, %v815
    %v820 = vand.u32 2147483647, %v810
    %vm821 = vcmp.eq.f32.partialorder %v820, 8.507059e+37
    %v822 = vand.u32 %v810, 2147483648
    %v823 = vor.u32 1.1754944e-38, %v822
    %v824 = vsel %vm821, %v823, %v819
    %v825 = vmul.f32 %v800, %v824
    %v826 = vmin.f32 %v825, 1.0
    %v827 = vmax.f32 %v826, -1.0
    %v828 = vmul.f32 %v787, %v787
    %v829 = vmin.f32 16.0, %v828
    %v830 = vmul.f32 %v829, 2.1237322e-06
    %v831 = vadd.f32 %v830, 0.00028619796
    %v832 = vmul.f32 %v829, %v831
    %v833 = vadd.f32 %v832, 0.0036580483
    %v834 = vmul.f32 %v829, %v833
    %v835 = vadd.f32 %v834, 0.05243302
    %v836 = vmul.f32 %v829, %v835
    %v837 = vadd.f32 %v836, 0.18741608
    %v838 = vmul.f32 %v829, %v837
    %v839 = vadd.f32 %v838, 1.1283791
    %v840 = vmul.f32 %v787, %v839
    %v841 = vmul.f32 %v829, 3.8918573e-05
    %v842 = vadd.f32 %v841, 0.001143296
    %v843 = vmul.f32 %v829, %v842
    %v844 = vadd.f32 %v843, 0.014752088
    %v845 = vmul.f32 %v829, %v844
    %v846 = vadd.f32 %v845, 0.112945676
    %v847 = vmul.f32 %v829, %v846
    %v848 = vadd.f32 %v847, 0.4994258
    %v849 = vmul.f32 %v829, %v848
    %v850 = vadd.f32 %v849, 1.0
    %v851 = vrcp.pop %v850
    %v852 = vmul.f32 %v850, %v851
    %v853 = vsub.f32 1.0, %v852
    %v854 = vmul.f32 %v851, %v853
    %v855 = vadd.f32 %v851, %v854
    %vm856 = vweird.f32 %v850
    %vm857 = vweird.f32 %v851
    %vm858 = vmor %vm856, %vm857
    %v859 = vsel %vm858, %v851, %v855
    %v860 = vand.u32 2147483647, %v850
    %vm861 = vcmp.eq.f32.partialorder %v860, 8.507059e+37
    %v862 = vand.u32 %v850, 2147483648
    %v863 = vor.u32 1.1754944e-38, %v862
    %v864 = vsel %vm861, %v863, %v859
    %v865 = vmul.f32 %v840, %v864
    %v866 = vmin.f32 %v865, 1.0
    %v867 = vmax.f32 %v866, -1.0
    %v868 = vadd.f32 %v827, 1.0
    %v869 = vadd.f32 %v867, 1.0
    %v870 = vmul.f32 %v784, %v868
    %v871 = vmul.f32 %v785, %v869
    %v872 = vld [vmem:[%s4] sm:$0xff]
    %v873 = vld [vmem:[%s4 + $0x8] sm:$0xff]
    %v874 = vld [vmem:[%s4 + $0x10] sm:$0xff]
    %v875 = vld [vmem:[%s4 + $0x18] sm:$0xff]
    %v876 = vld [vmem:[%s4 + $0x20] sm:$0xff]
    %v877 = vld [vmem:[%s4 + $0x28] sm:$0xff]
    %v878 = vld [vmem:[%s4 + $0x30] sm:$0xff]
    %v879 = vld [vmem:[%s4 + $0x38] sm:$0xff]
    %v880 = vperm.slane %v57, 5
    %vm881 = vcmask 523264
    %v883 = vsel %vm881, %v870, 0
    %v886 = vsel %vm881, %v871, 0
    %888 = vmatpush.msra.mxu0 0.0
    %889 = vmatpush.msra.mxu0 0.0
    %890 = vmatpush.msra.mxu0 0.0
    %891 = vmatpush.msra.mxu0 0.0
    %892 = vmatpush.msra.mxu0 0.0
    %893 = vmatpush.msra.mxu0 0.0
    %894 = vmatpush.msra.mxu0 0.0
    %895 = vmatpush.msra.mxu0 0.0
    %896 = vmatpush.msra.mxu0 %v879
    %897 = vmatpush.msra.mxu0 %v878
    %898 = vmatpush.msra.mxu0 %v877
    %899 = vmatpush.msra.mxu0 %v876
    %900 = vmatpush.msra.mxu0 %v875
    %901 = vmatpush.msra.mxu0 %v874
    %902 = vmatpush.msra.mxu0 %v873
    %903 = vmatpush.msra.mxu0 %v872
    %904 = vmatmul.f32.gmra.mxu0 %v883
    %v905 = vpop.f32.mrf.mxu0
    %v906 = vadd.f32 %v880, %v905
    %907 = vmatmul.f32.gmra.mxu0 %v886
    %v908 = vpop.f32.mrf.mxu0
    %v909 = vadd.f32 %v880, %v908
    %910 = vdwg.mxu0
    %v911 = vadd.f32 %v906, %v748
    %v912 = vadd.f32 %v909, %v749
    %v913 = vsel %vm63, %v911, 0.0
    %914 = vadd.xlane.f32.xlu0 %v913
    %v915 = vpop.xlane.xlu0 %914
    %v916 = vsel %vm63, %v912, 0.0
    %917 = vadd.xlane.f32.xlu0 %v916
    %v918 = vpop.xlane.xlu0 %917
    %v919 = vmul.f32 %v915, %v705
    %v920 = vmul.f32 %v918, %v705
    %v921 = vsub.f32 %v911, %v919
    %v922 = vsub.f32 %v912, %v920
    %v923 = vmul.f32 %v921, %v921
    %v924 = vmul.f32 %v922, %v922
    %v925 = vsel %vm63, %v923, 0.0
    %926 = vadd.xlane.f32.xlu0 %v925
    %v927 = vpop.xlane.xlu0 %926
    %v928 = vsel %vm63, %v924, 0.0
    %929 = vadd.xlane.f32.xlu0 %v928
    %v930 = vpop.xlane.xlu0 %929
    %v931 = vmul.f32 %v927, %v705
    %v932 = vmul.f32 %v930, %v705
    %v933 = vadd.f32 %v931, 1e-12
    %v934 = vadd.f32 %v932, 1e-12
    %v935 = vrsqrt.pop %v933
    %v936 = vmul.f32 %v935, %v933
    %v937 = vmul.f32 %v936, %v935
    %v938 = vmul.f32 0.5, %v937
    %v939 = vsub.f32 1.5, %v938
    %v940 = vmul.f32 %v935, %v939
    %vm941 = vweird.f32 %v933
    %vm942 = vweird.f32 %v935
    %vm943 = vmor %vm941, %vm942
    %v944 = vsel %vm943, %v935, %v940
    %v945 = vrsqrt.pop %v934
    %v946 = vmul.f32 %v945, %v934
    %v947 = vmul.f32 %v946, %v945
    %v948 = vmul.f32 0.5, %v947
    %v949 = vsub.f32 1.5, %v948
    %v950 = vmul.f32 %v945, %v949
    %vm951 = vweird.f32 %v934
    %vm952 = vweird.f32 %v945
    %vm953 = vmor %vm951, %vm952
    %v954 = vsel %vm953, %v945, %v950
    %v955 = vmul.f32 %v921, %v944
    %v956 = vmul.f32 %v922, %v954
    %v957 = vperm.slane %v57, 6
    %v958 = vmul.f32 %v955, %v957
    %v959 = vmul.f32 %v956, %v957
    %v960 = vperm.slane %v57, 7
    %v961 = vadd.f32 %v958, %v960
    %v962 = vadd.f32 %v959, %v960
    %s963 = scalar_lea.vmem [#allocation5], 8
    %v964 = vld [vmem:[%s963] sm:$0xff]
    %s965 = scalar_lea.vmem %s1, 32
    %v966 = vld [vmem:[%s965] sm:$0xff]
    %v967 = vld [vmem:[%s965 + $0x8] sm:$0xff]
    %v968 = vld [vmem:[%s965 + $0x10] sm:$0xff]
    %v969 = vld [vmem:[%s965 + $0x18] sm:$0xff]
    %v970 = vperm.slane %v964, 0
    %v972 = vsel %vm63, %v961, 0
    %v975 = vsel %vm63, %v962, 0
    %977 = vmatpush.msra.mxu0 0.0
    %978 = vmatpush.msra.mxu0 0.0
    %979 = vmatpush.msra.mxu0 0.0
    %980 = vmatpush.msra.mxu0 0.0
    %981 = vmatpush.msra.mxu0 0.0
    %982 = vmatpush.msra.mxu0 0.0
    %983 = vmatpush.msra.mxu0 0.0
    %984 = vmatpush.msra.mxu0 0.0
    %985 = vmatpush.msra.mxu0 0.0
    %986 = vmatpush.msra.mxu0 0.0
    %987 = vmatpush.msra.mxu0 0.0
    %988 = vmatpush.msra.mxu0 0.0
    %989 = vmatpush.msra.mxu0 %v969
    %990 = vmatpush.msra.mxu0 %v968
    %991 = vmatpush.msra.mxu0 %v967
    %992 = vmatpush.msra.mxu0 %v966
    %993 = vmatmul.f32.gmra.mxu0 %v972
    %v994 = vpop.f32.mrf.mxu0
    %v995 = vadd.f32 %v970, %v994
    %996 = vmatmul.f32.gmra.mxu0 %v975
    %v997 = vpop.f32.mrf.mxu0
    %v998 = vadd.f32 %v970, %v997
    %999 = vdwg.mxu0
    %1001 = vrot.lane.b32.xlu0 %v995, 96
    %v1002 = vpop.permute.xlu0 %1001
    %v1003 = vsel %vm96, %v995, 0
    %v1005 = vsel %vm96, %v1002, 0
    %1007 = vmatpush.xpose.msra.mxu0 0.0
    %1008 = vmatpush.xpose.msra.mxu0 0.0
    %1009 = vmatpush.xpose.msra.mxu0 0.0
    %1010 = vmatpush.xpose.msra.mxu0 0.0
    %1011 = vmatpush.xpose.msra.mxu0 0.0
    %1012 = vmatpush.xpose.msra.mxu0 0.0
    %1013 = vmatpush.xpose.msra.mxu0 0.0
    %1014 = vmatpush.xpose.msra.mxu0 0.0
    %1015 = vmatpush.xpose.msra.mxu0 0.0
    %1016 = vmatpush.xpose.msra.mxu0 0.0
    %1017 = vmatpush.xpose.msra.mxu0 0.0
    %1018 = vmatpush.xpose.msra.mxu0 0.0
    %1019 = vmatpush.xpose.msra.mxu0 0.0
    %1020 = vmatpush.xpose.msra.mxu0 0.0
    %1021 = vmatpush.xpose.msra.mxu0 0.0
    %1022 = vmatpush.xpose.msra.mxu0 %v1005
    %1023 = vmatmul.f32.gmra.mxu0 %v1003
    %v1024 = vpop.f32.mrf.mxu0
    %v1025 = vadd.f32 0.0, %v1024
    %1026 = vdwg.mxu0
    %v1027 = vmul.f32 %v1025, 0.35355338
    %v1028 = vsel %vm96, %v1027, -inf
    %1029 = vmax.xlane.f32.xlu0 %v1028
    %v1030 = vpop.xlane.xlu0 %1029
    %v1031 = vsub.f32 %v1027, %v1030
    %v1032 = vmul.f32 %v1031, 1.442695
    %v1033 = vpow.pop %v1032
    %v1034 = vsel %vm96, %v1033, 0.0
    %1035 = vadd.xlane.f32.xlu0 %v1034
    %v1036 = vpop.xlane.xlu0 %1035
    %v1037 = vrcp.pop %v1036
    %v1038 = vmul.f32 %v1033, %v1037
    %1039 = vrot.lane.b32.xlu0 %v995, 64
    %v1040 = vpop.permute.xlu0 %1039
    %v1043 = vsel %vm96, %v1038, 0
    %1045 = vmatpush.msra.mxu0 0.0
    %1046 = vmatpush.msra.mxu0 0.0
    %1047 = vmatpush.msra.mxu0 0.0
    %1048 = vmatpush.msra.mxu0 0.0
    %1049 = vmatpush.msra.mxu0 0.0
    %1050 = vmatpush.msra.mxu0 0.0
    %1051 = vmatpush.msra.mxu0 0.0
    %1052 = vmatpush.msra.mxu0 0.0
    %1053 = vmatpush.msra.mxu0 0.0
    %1054 = vmatpush.msra.mxu0 0.0
    %1055 = vmatpush.msra.mxu0 0.0
    %1056 = vmatpush.msra.mxu0 0.0
    %1057 = vmatpush.msra.mxu0 0.0
    %1058 = vmatpush.msra.mxu0 0.0
    %1059 = vmatpush.msra.mxu0 0.0
    %1060 = vmatpush.msra.mxu0 %v1040
    %1061 = vmatmul.f32.gmra.mxu0 %v1043
    %v1062 = vpop.f32.mrf.mxu0
    %v1063 = vadd.f32 0.0, %v1062
    %1064 = vdwg.mxu0
    %1065 = vst.msk [vmem:[#allocation2] sm:$0xff] %vm96, %v1063
    %1066 = vrot.lane.b32.xlu0 %v995, 120
    %v1067 = vpop.permute.xlu0 %1066
    %1068 = vrot.lane.b32.xlu0 %v995, 88
    %v1069 = vpop.permute.xlu0 %1068
    %v1070 = vsel %vm96, %v1067, 0
    %v1072 = vsel %vm96, %v1069, 0
    %1074 = vmatpush.xpose.msra.mxu0 0.0
    %1075 = vmatpush.xpose.msra.mxu0 0.0
    %1076 = vmatpush.xpose.msra.mxu0 0.0
    %1077 = vmatpush.xpose.msra.mxu0 0.0
    %1078 = vmatpush.xpose.msra.mxu0 0.0
    %1079 = vmatpush.xpose.msra.mxu0 0.0
    %1080 = vmatpush.xpose.msra.mxu0 0.0
    %1081 = vmatpush.xpose.msra.mxu0 0.0
    %1082 = vmatpush.xpose.msra.mxu0 0.0
    %1083 = vmatpush.xpose.msra.mxu0 0.0
    %1084 = vmatpush.xpose.msra.mxu0 0.0
    %1085 = vmatpush.xpose.msra.mxu0 0.0
    %1086 = vmatpush.xpose.msra.mxu0 0.0
    %1087 = vmatpush.xpose.msra.mxu0 0.0
    %1088 = vmatpush.xpose.msra.mxu0 0.0
    %1089 = vmatpush.xpose.msra.mxu0 %v1072
    %1090 = vmatmul.f32.gmra.mxu0 %v1070
    %v1091 = vpop.f32.mrf.mxu0
    %v1092 = vadd.f32 0.0, %v1091
    %1093 = vdwg.mxu0
    %v1094 = vmul.f32 %v1092, 0.35355338
    %v1095 = vsel %vm96, %v1094, -inf
    %1096 = vmax.xlane.f32.xlu0 %v1095
    %v1097 = vpop.xlane.xlu0 %1096
    %v1098 = vsub.f32 %v1094, %v1097
    %v1099 = vmul.f32 %v1098, 1.442695
    %v1100 = vpow.pop %v1099
    %v1101 = vsel %vm96, %v1100, 0.0
    %1102 = vadd.xlane.f32.xlu0 %v1101
    %v1103 = vpop.xlane.xlu0 %1102
    %v1104 = vrcp.pop %v1103
    %v1105 = vmul.f32 %v1100, %v1104
    %1106 = vrot.lane.b32.xlu0 %v995, 56
    %v1107 = vpop.permute.xlu0 %1106
    %v1110 = vsel %vm96, %v1105, 0
    %1112 = vmatpush.msra.mxu0 0.0
    %1113 = vmatpush.msra.mxu0 0.0
    %1114 = vmatpush.msra.mxu0 0.0
    %1115 = vmatpush.msra.mxu0 0.0
    %1116 = vmatpush.msra.mxu0 0.0
    %1117 = vmatpush.msra.mxu0 0.0
    %1118 = vmatpush.msra.mxu0 0.0
    %1119 = vmatpush.msra.mxu0 0.0
    %1120 = vmatpush.msra.mxu0 0.0
    %1121 = vmatpush.msra.mxu0 0.0
    %1122 = vmatpush.msra.mxu0 0.0
    %1123 = vmatpush.msra.mxu0 0.0
    %1124 = vmatpush.msra.mxu0 0.0
    %1125 = vmatpush.msra.mxu0 0.0
    %1126 = vmatpush.msra.mxu0 0.0
    %1127 = vmatpush.msra.mxu0 %v1107
    %1128 = vmatmul.f32.gmra.mxu0 %v1110
    %v1129 = vpop.f32.mrf.mxu0
    %v1130 = vadd.f32 0.0, %v1129
    %1131 = vdwg.mxu0
    %1133 = vrot.lane.b32.xlu0 %v1130, 8
    %v1134 = vpop.permute.xlu0 %1133
    %1136 = vst.msk [vmem:[#allocation2] sm:$0xff] %vm230, %v1134
    %1137 = vrot.lane.b32.xlu0 %v995, 112
    %v1138 = vpop.permute.xlu0 %1137
    %1139 = vrot.lane.b32.xlu0 %v995, 80
    %v1140 = vpop.permute.xlu0 %1139
    %v1141 = vsel %vm96, %v1138, 0
    %v1143 = vsel %vm96, %v1140, 0
    %1145 = vmatpush.xpose.msra.mxu0 0.0
    %1146 = vmatpush.xpose.msra.mxu0 0.0
    %1147 = vmatpush.xpose.msra.mxu0 0.0
    %1148 = vmatpush.xpose.msra.mxu0 0.0
    %1149 = vmatpush.xpose.msra.mxu0 0.0
    %1150 = vmatpush.xpose.msra.mxu0 0.0
    %1151 = vmatpush.xpose.msra.mxu0 0.0
    %1152 = vmatpush.xpose.msra.mxu0 0.0
    %1153 = vmatpush.xpose.msra.mxu0 0.0
    %1154 = vmatpush.xpose.msra.mxu0 0.0
    %1155 = vmatpush.xpose.msra.mxu0 0.0
    %1156 = vmatpush.xpose.msra.mxu0 0.0
    %1157 = vmatpush.xpose.msra.mxu0 0.0
    %1158 = vmatpush.xpose.msra.mxu0 0.0
    %1159 = vmatpush.xpose.msra.mxu0 0.0
    %1160 = vmatpush.xpose.msra.mxu0 %v1143
    %1161 = vmatmul.f32.gmra.mxu0 %v1141
    %v1162 = vpop.f32.mrf.mxu0
    %v1163 = vadd.f32 0.0, %v1162
    %1164 = vdwg.mxu0
    %v1165 = vmul.f32 %v1163, 0.35355338
    %v1166 = vsel %vm96, %v1165, -inf
    %1167 = vmax.xlane.f32.xlu0 %v1166
    %v1168 = vpop.xlane.xlu0 %1167
    %v1169 = vsub.f32 %v1165, %v1168
    %v1170 = vmul.f32 %v1169, 1.442695
    %v1171 = vpow.pop %v1170
    %v1172 = vsel %vm96, %v1171, 0.0
    %1173 = vadd.xlane.f32.xlu0 %v1172
    %v1174 = vpop.xlane.xlu0 %1173
    %v1175 = vrcp.pop %v1174
    %v1176 = vmul.f32 %v1171, %v1175
    %1177 = vrot.lane.b32.xlu0 %v995, 48
    %v1178 = vpop.permute.xlu0 %1177
    %v1181 = vsel %vm96, %v1176, 0
    %1183 = vmatpush.msra.mxu0 0.0
    %1184 = vmatpush.msra.mxu0 0.0
    %1185 = vmatpush.msra.mxu0 0.0
    %1186 = vmatpush.msra.mxu0 0.0
    %1187 = vmatpush.msra.mxu0 0.0
    %1188 = vmatpush.msra.mxu0 0.0
    %1189 = vmatpush.msra.mxu0 0.0
    %1190 = vmatpush.msra.mxu0 0.0
    %1191 = vmatpush.msra.mxu0 0.0
    %1192 = vmatpush.msra.mxu0 0.0
    %1193 = vmatpush.msra.mxu0 0.0
    %1194 = vmatpush.msra.mxu0 0.0
    %1195 = vmatpush.msra.mxu0 0.0
    %1196 = vmatpush.msra.mxu0 0.0
    %1197 = vmatpush.msra.mxu0 0.0
    %1198 = vmatpush.msra.mxu0 %v1178
    %1199 = vmatmul.f32.gmra.mxu0 %v1181
    %v1200 = vpop.f32.mrf.mxu0
    %v1201 = vadd.f32 0.0, %v1200
    %1202 = vdwg.mxu0
    %1204 = vrot.lane.b32.xlu0 %v1201, 16
    %v1205 = vpop.permute.xlu0 %1204
    %1207 = vst.msk [vmem:[#allocation2] sm:$0xff] %vm302, %v1205
    %1208 = vrot.lane.b32.xlu0 %v995, 104
    %v1209 = vpop.permute.xlu0 %1208
    %1210 = vrot.lane.b32.xlu0 %v995, 72
    %v1211 = vpop.permute.xlu0 %1210
    %v1212 = vsel %vm96, %v1209, 0
    %v1214 = vsel %vm96, %v1211, 0
    %1216 = vmatpush.xpose.msra.mxu0 0.0
    %1217 = vmatpush.xpose.msra.mxu0 0.0
    %1218 = vmatpush.xpose.msra.mxu0 0.0
    %1219 = vmatpush.xpose.msra.mxu0 0.0
    %1220 = vmatpush.xpose.msra.mxu0 0.0
    %1221 = vmatpush.xpose.msra.mxu0 0.0
    %1222 = vmatpush.xpose.msra.mxu0 0.0
    %1223 = vmatpush.xpose.msra.mxu0 0.0
    %1224 = vmatpush.xpose.msra.mxu0 0.0
    %1225 = vmatpush.xpose.msra.mxu0 0.0
    %1226 = vmatpush.xpose.msra.mxu0 0.0
    %1227 = vmatpush.xpose.msra.mxu0 0.0
    %1228 = vmatpush.xpose.msra.mxu0 0.0
    %1229 = vmatpush.xpose.msra.mxu0 0.0
    %1230 = vmatpush.xpose.msra.mxu0 0.0
    %1231 = vmatpush.xpose.msra.mxu0 %v1214
    %1232 = vmatmul.f32.gmra.mxu0 %v1212
    %v1233 = vpop.f32.mrf.mxu0
    %v1234 = vadd.f32 0.0, %v1233
    %1235 = vdwg.mxu0
    %v1236 = vmul.f32 %v1234, 0.35355338
    %v1237 = vsel %vm96, %v1236, -inf
    %1238 = vmax.xlane.f32.xlu0 %v1237
    %v1239 = vpop.xlane.xlu0 %1238
    %v1240 = vsub.f32 %v1236, %v1239
    %v1241 = vmul.f32 %v1240, 1.442695
    %v1242 = vpow.pop %v1241
    %v1243 = vsel %vm96, %v1242, 0.0
    %1244 = vadd.xlane.f32.xlu0 %v1243
    %v1245 = vpop.xlane.xlu0 %1244
    %v1246 = vrcp.pop %v1245
    %v1247 = vmul.f32 %v1242, %v1246
    %1248 = vrot.lane.b32.xlu0 %v995, 40
    %v1249 = vpop.permute.xlu0 %1248
    %v1252 = vsel %vm96, %v1247, 0
    %1254 = vmatpush.msra.mxu0 0.0
    %1255 = vmatpush.msra.mxu0 0.0
    %1256 = vmatpush.msra.mxu0 0.0
    %1257 = vmatpush.msra.mxu0 0.0
    %1258 = vmatpush.msra.mxu0 0.0
    %1259 = vmatpush.msra.mxu0 0.0
    %1260 = vmatpush.msra.mxu0 0.0
    %1261 = vmatpush.msra.mxu0 0.0
    %1262 = vmatpush.msra.mxu0 0.0
    %1263 = vmatpush.msra.mxu0 0.0
    %1264 = vmatpush.msra.mxu0 0.0
    %1265 = vmatpush.msra.mxu0 0.0
    %1266 = vmatpush.msra.mxu0 0.0
    %1267 = vmatpush.msra.mxu0 0.0
    %1268 = vmatpush.msra.mxu0 0.0
    %1269 = vmatpush.msra.mxu0 %v1249
    %1270 = vmatmul.f32.gmra.mxu0 %v1252
    %v1271 = vpop.f32.mrf.mxu0
    %v1272 = vadd.f32 0.0, %v1271
    %1273 = vdwg.mxu0
    %1275 = vrot.lane.b32.xlu0 %v1272, 24
    %v1276 = vpop.permute.xlu0 %1275
    %1278 = vst.msk [vmem:[#allocation2] sm:$0xff] %vm374, %v1276
    %1280 = vrot.lane.b32.xlu0 %v998, 96
    %v1281 = vpop.permute.xlu0 %1280
    %v1282 = vsel %vm96, %v998, 0
    %v1284 = vsel %vm96, %v1281, 0
    %1286 = vmatpush.xpose.msra.mxu0 0.0
    %1287 = vmatpush.xpose.msra.mxu0 0.0
    %1288 = vmatpush.xpose.msra.mxu0 0.0
    %1289 = vmatpush.xpose.msra.mxu0 0.0
    %1290 = vmatpush.xpose.msra.mxu0 0.0
    %1291 = vmatpush.xpose.msra.mxu0 0.0
    %1292 = vmatpush.xpose.msra.mxu0 0.0
    %1293 = vmatpush.xpose.msra.mxu0 0.0
    %1294 = vmatpush.xpose.msra.mxu0 0.0
    %1295 = vmatpush.xpose.msra.mxu0 0.0
    %1296 = vmatpush.xpose.msra.mxu0 0.0
    %1297 = vmatpush.xpose.msra.mxu0 0.0
    %1298 = vmatpush.xpose.msra.mxu0 0.0
    %1299 = vmatpush.xpose.msra.mxu0 0.0
    %1300 = vmatpush.xpose.msra.mxu0 0.0
    %1301 = vmatpush.xpose.msra.mxu0 %v1284
    %1302 = vmatmul.f32.gmra.mxu0 %v1282
    %v1303 = vpop.f32.mrf.mxu0
    %v1304 = vadd.f32 0.0, %v1303
    %1305 = vdwg.mxu0
    %v1306 = vmul.f32 %v1304, 0.35355338
    %v1307 = vsel %vm96, %v1306, -inf
    %1308 = vmax.xlane.f32.xlu0 %v1307
    %v1309 = vpop.xlane.xlu0 %1308
    %v1310 = vsub.f32 %v1306, %v1309
    %v1311 = vmul.f32 %v1310, 1.442695
    %v1312 = vpow.pop %v1311
    %v1313 = vsel %vm96, %v1312, 0.0
    %1314 = vadd.xlane.f32.xlu0 %v1313
    %v1315 = vpop.xlane.xlu0 %1314
    %v1316 = vrcp.pop %v1315
    %v1317 = vmul.f32 %v1312, %v1316
    %1318 = vrot.lane.b32.xlu0 %v998, 64
    %v1319 = vpop.permute.xlu0 %1318
    %v1322 = vsel %vm96, %v1317, 0
    %1324 = vmatpush.msra.mxu0 0.0
    %1325 = vmatpush.msra.mxu0 0.0
    %1326 = vmatpush.msra.mxu0 0.0
    %1327 = vmatpush.msra.mxu0 0.0
    %1328 = vmatpush.msra.mxu0 0.0
    %1329 = vmatpush.msra.mxu0 0.0
    %1330 = vmatpush.msra.mxu0 0.0
    %1331 = vmatpush.msra.mxu0 0.0
    %1332 = vmatpush.msra.mxu0 0.0
    %1333 = vmatpush.msra.mxu0 0.0
    %1334 = vmatpush.msra.mxu0 0.0
    %1335 = vmatpush.msra.mxu0 0.0
    %1336 = vmatpush.msra.mxu0 0.0
    %1337 = vmatpush.msra.mxu0 0.0
    %1338 = vmatpush.msra.mxu0 0.0
    %1339 = vmatpush.msra.mxu0 %v1319
    %1340 = vmatmul.f32.gmra.mxu0 %v1322
    %v1341 = vpop.f32.mrf.mxu0
    %v1342 = vadd.f32 0.0, %v1341
    %1343 = vdwg.mxu0
    %1344 = vst.msk [vmem:[#allocation2 + $0x8] sm:$0xff] %vm96, %v1342
    %1345 = vrot.lane.b32.xlu0 %v998, 120
    %v1346 = vpop.permute.xlu0 %1345
    %1347 = vrot.lane.b32.xlu0 %v998, 88
    %v1348 = vpop.permute.xlu0 %1347
    %v1349 = vsel %vm96, %v1346, 0
    %v1351 = vsel %vm96, %v1348, 0
    %1353 = vmatpush.xpose.msra.mxu0 0.0
    %1354 = vmatpush.xpose.msra.mxu0 0.0
    %1355 = vmatpush.xpose.msra.mxu0 0.0
    %1356 = vmatpush.xpose.msra.mxu0 0.0
    %1357 = vmatpush.xpose.msra.mxu0 0.0
    %1358 = vmatpush.xpose.msra.mxu0 0.0
    %1359 = vmatpush.xpose.msra.mxu0 0.0
    %1360 = vmatpush.xpose.msra.mxu0 0.0
    %1361 = vmatpush.xpose.msra.mxu0 0.0
    %1362 = vmatpush.xpose.msra.mxu0 0.0
    %1363 = vmatpush.xpose.msra.mxu0 0.0
    %1364 = vmatpush.xpose.msra.mxu0 0.0
    %1365 = vmatpush.xpose.msra.mxu0 0.0
    %1366 = vmatpush.xpose.msra.mxu0 0.0
    %1367 = vmatpush.xpose.msra.mxu0 0.0
    %1368 = vmatpush.xpose.msra.mxu0 %v1351
    %1369 = vmatmul.f32.gmra.mxu0 %v1349
    %v1370 = vpop.f32.mrf.mxu0
    %v1371 = vadd.f32 0.0, %v1370
    %1372 = vdwg.mxu0
    %v1373 = vmul.f32 %v1371, 0.35355338
    %v1374 = vsel %vm96, %v1373, -inf
    %1375 = vmax.xlane.f32.xlu0 %v1374
    %v1376 = vpop.xlane.xlu0 %1375
    %v1377 = vsub.f32 %v1373, %v1376
    %v1378 = vmul.f32 %v1377, 1.442695
    %v1379 = vpow.pop %v1378
    %v1380 = vsel %vm96, %v1379, 0.0
    %1381 = vadd.xlane.f32.xlu0 %v1380
    %v1382 = vpop.xlane.xlu0 %1381
    %v1383 = vrcp.pop %v1382
    %v1384 = vmul.f32 %v1379, %v1383
    %1385 = vrot.lane.b32.xlu0 %v998, 56
    %v1386 = vpop.permute.xlu0 %1385
    %v1389 = vsel %vm96, %v1384, 0
    %1391 = vmatpush.msra.mxu0 0.0
    %1392 = vmatpush.msra.mxu0 0.0
    %1393 = vmatpush.msra.mxu0 0.0
    %1394 = vmatpush.msra.mxu0 0.0
    %1395 = vmatpush.msra.mxu0 0.0
    %1396 = vmatpush.msra.mxu0 0.0
    %1397 = vmatpush.msra.mxu0 0.0
    %1398 = vmatpush.msra.mxu0 0.0
    %1399 = vmatpush.msra.mxu0 0.0
    %1400 = vmatpush.msra.mxu0 0.0
    %1401 = vmatpush.msra.mxu0 0.0
    %1402 = vmatpush.msra.mxu0 0.0
    %1403 = vmatpush.msra.mxu0 0.0
    %1404 = vmatpush.msra.mxu0 0.0
    %1405 = vmatpush.msra.mxu0 0.0
    %1406 = vmatpush.msra.mxu0 %v1386
    %1407 = vmatmul.f32.gmra.mxu0 %v1389
    %v1408 = vpop.f32.mrf.mxu0
    %v1409 = vadd.f32 0.0, %v1408
    %1410 = vdwg.mxu0
    %1412 = vrot.lane.b32.xlu0 %v1409, 8
    %v1413 = vpop.permute.xlu0 %1412
    %1415 = vst.msk [vmem:[#allocation2 + $0x8] sm:$0xff] %vm230, %v1413
    %1416 = vrot.lane.b32.xlu0 %v998, 112
    %v1417 = vpop.permute.xlu0 %1416
    %1418 = vrot.lane.b32.xlu0 %v998, 80
    %v1419 = vpop.permute.xlu0 %1418
    %v1420 = vsel %vm96, %v1417, 0
    %v1422 = vsel %vm96, %v1419, 0
    %1424 = vmatpush.xpose.msra.mxu0 0.0
    %1425 = vmatpush.xpose.msra.mxu0 0.0
    %1426 = vmatpush.xpose.msra.mxu0 0.0
    %1427 = vmatpush.xpose.msra.mxu0 0.0
    %1428 = vmatpush.xpose.msra.mxu0 0.0
    %1429 = vmatpush.xpose.msra.mxu0 0.0
    %1430 = vmatpush.xpose.msra.mxu0 0.0
    %1431 = vmatpush.xpose.msra.mxu0 0.0
    %1432 = vmatpush.xpose.msra.mxu0 0.0
    %1433 = vmatpush.xpose.msra.mxu0 0.0
    %1434 = vmatpush.xpose.msra.mxu0 0.0
    %1435 = vmatpush.xpose.msra.mxu0 0.0
    %1436 = vmatpush.xpose.msra.mxu0 0.0
    %1437 = vmatpush.xpose.msra.mxu0 0.0
    %1438 = vmatpush.xpose.msra.mxu0 0.0
    %1439 = vmatpush.xpose.msra.mxu0 %v1422
    %1440 = vmatmul.f32.gmra.mxu0 %v1420
    %v1441 = vpop.f32.mrf.mxu0
    %v1442 = vadd.f32 0.0, %v1441
    %1443 = vdwg.mxu0
    %v1444 = vmul.f32 %v1442, 0.35355338
    %v1445 = vsel %vm96, %v1444, -inf
    %1446 = vmax.xlane.f32.xlu0 %v1445
    %v1447 = vpop.xlane.xlu0 %1446
    %v1448 = vsub.f32 %v1444, %v1447
    %v1449 = vmul.f32 %v1448, 1.442695
    %v1450 = vpow.pop %v1449
    %v1451 = vsel %vm96, %v1450, 0.0
    %1452 = vadd.xlane.f32.xlu0 %v1451
    %v1453 = vpop.xlane.xlu0 %1452
    %v1454 = vrcp.pop %v1453
    %v1455 = vmul.f32 %v1450, %v1454
    %1456 = vrot.lane.b32.xlu0 %v998, 48
    %v1457 = vpop.permute.xlu0 %1456
    %v1460 = vsel %vm96, %v1455, 0
    %1462 = vmatpush.msra.mxu0 0.0
    %1463 = vmatpush.msra.mxu0 0.0
    %1464 = vmatpush.msra.mxu0 0.0
    %1465 = vmatpush.msra.mxu0 0.0
    %1466 = vmatpush.msra.mxu0 0.0
    %1467 = vmatpush.msra.mxu0 0.0
    %1468 = vmatpush.msra.mxu0 0.0
    %1469 = vmatpush.msra.mxu0 0.0
    %1470 = vmatpush.msra.mxu0 0.0
    %1471 = vmatpush.msra.mxu0 0.0
    %1472 = vmatpush.msra.mxu0 0.0
    %1473 = vmatpush.msra.mxu0 0.0
    %1474 = vmatpush.msra.mxu0 0.0
    %1475 = vmatpush.msra.mxu0 0.0
    %1476 = vmatpush.msra.mxu0 0.0
    %1477 = vmatpush.msra.mxu0 %v1457
    %1478 = vmatmul.f32.gmra.mxu0 %v1460
    %v1479 = vpop.f32.mrf.mxu0
    %v1480 = vadd.f32 0.0, %v1479
    %1481 = vdwg.mxu0
    %1483 = vrot.lane.b32.xlu0 %v1480, 16
    %v1484 = vpop.permute.xlu0 %1483
    %1486 = vst.msk [vmem:[#allocation2 + $0x8] sm:$0xff] %vm302, %v1484
    %1487 = vrot.lane.b32.xlu0 %v998, 104
    %v1488 = vpop.permute.xlu0 %1487
    %1489 = vrot.lane.b32.xlu0 %v998, 72
    %v1490 = vpop.permute.xlu0 %1489
    %v1491 = vsel %vm96, %v1488, 0
    %v1493 = vsel %vm96, %v1490, 0
    %1495 = vmatpush.xpose.msra.mxu0 0.0
    %1496 = vmatpush.xpose.msra.mxu0 0.0
    %1497 = vmatpush.xpose.msra.mxu0 0.0
    %1498 = vmatpush.xpose.msra.mxu0 0.0
    %1499 = vmatpush.xpose.msra.mxu0 0.0
    %1500 = vmatpush.xpose.msra.mxu0 0.0
    %1501 = vmatpush.xpose.msra.mxu0 0.0
    %1502 = vmatpush.xpose.msra.mxu0 0.0
    %1503 = vmatpush.xpose.msra.mxu0 0.0
    %1504 = vmatpush.xpose.msra.mxu0 0.0
    %1505 = vmatpush.xpose.msra.mxu0 0.0
    %1506 = vmatpush.xpose.msra.mxu0 0.0
    %1507 = vmatpush.xpose.msra.mxu0 0.0
    %1508 = vmatpush.xpose.msra.mxu0 0.0
    %1509 = vmatpush.xpose.msra.mxu0 0.0
    %1510 = vmatpush.xpose.msra.mxu0 %v1493
    %1511 = vmatmul.f32.gmra.mxu0 %v1491
    %v1512 = vpop.f32.mrf.mxu0
    %v1513 = vadd.f32 0.0, %v1512
    %1514 = vdwg.mxu0
    %v1515 = vmul.f32 %v1513, 0.35355338
    %v1516 = vsel %vm96, %v1515, -inf
    %1517 = vmax.xlane.f32.xlu0 %v1516
    %v1518 = vpop.xlane.xlu0 %1517
    %v1519 = vsub.f32 %v1515, %v1518
    %v1520 = vmul.f32 %v1519, 1.442695
    %v1521 = vpow.pop %v1520
    %v1522 = vsel %vm96, %v1521, 0.0
    %1523 = vadd.xlane.f32.xlu0 %v1522
    %v1524 = vpop.xlane.xlu0 %1523
    %v1525 = vrcp.pop %v1524
    %v1526 = vmul.f32 %v1521, %v1525
    %1527 = vrot.lane.b32.xlu0 %v998, 40
    %v1528 = vpop.permute.xlu0 %1527
    %v1531 = vsel %vm96, %v1526, 0
    %1533 = vmatpush.msra.mxu0 0.0
    %1534 = vmatpush.msra.mxu0 0.0
    %1535 = vmatpush.msra.mxu0 0.0
    %1536 = vmatpush.msra.mxu0 0.0
    %1537 = vmatpush.msra.mxu0 0.0
    %1538 = vmatpush.msra.mxu0 0.0
    %1539 = vmatpush.msra.mxu0 0.0
    %1540 = vmatpush.msra.mxu0 0.0
    %1541 = vmatpush.msra.mxu0 0.0
    %1542 = vmatpush.msra.mxu0 0.0
    %1543 = vmatpush.msra.mxu0 0.0
    %1544 = vmatpush.msra.mxu0 0.0
    %1545 = vmatpush.msra.mxu0 0.0
    %1546 = vmatpush.msra.mxu0 0.0
    %1547 = vmatpush.msra.mxu0 0.0
    %1548 = vmatpush.msra.mxu0 %v1528
    %1549 = vmatmul.f32.gmra.mxu0 %v1531
    %v1550 = vpop.f32.mrf.mxu0
    %v1551 = vadd.f32 0.0, %v1550
    %1552 = vdwg.mxu0
    %1554 = vrot.lane.b32.xlu0 %v1551, 24
    %v1555 = vpop.permute.xlu0 %1554
    %1557 = vst.msk [vmem:[#allocation2 + $0x8] sm:$0xff] %vm374, %v1555
    %v1558 = vld [vmem:[#allocation2] sm:$0xff]
    %v1559 = vld [vmem:[#allocation2 + $0x8] sm:$0xff]
    %s1560 = scalar_lea.vmem %s2, 32
    %v1561 = vld [vmem:[%s1560] sm:$0xff]
    %v1562 = vld [vmem:[%s1560 + $0x8] sm:$0xff]
    %v1563 = vld [vmem:[%s1560 + $0x10] sm:$0xff]
    %v1564 = vld [vmem:[%s1560 + $0x18] sm:$0xff]
    %v1565 = vperm.slane %v964, 2
    %v1567 = vsel %vm63, %v1558, 0
    %v1570 = vsel %vm63, %v1559, 0
    %1572 = vmatpush.msra.mxu0 0.0
    %1573 = vmatpush.msra.mxu0 0.0
    %1574 = vmatpush.msra.mxu0 0.0
    %1575 = vmatpush.msra.mxu0 0.0
    %1576 = vmatpush.msra.mxu0 0.0
    %1577 = vmatpush.msra.mxu0 0.0
    %1578 = vmatpush.msra.mxu0 0.0
    %1579 = vmatpush.msra.mxu0 0.0
    %1580 = vmatpush.msra.mxu0 0.0
    %1581 = vmatpush.msra.mxu0 0.0
    %1582 = vmatpush.msra.mxu0 0.0
    %1583 = vmatpush.msra.mxu0 0.0
    %1584 = vmatpush.msra.mxu0 %v1564
    %1585 = vmatpush.msra.mxu0 %v1563
    %1586 = vmatpush.msra.mxu0 %v1562
    %1587 = vmatpush.msra.mxu0 %v1561
    %1588 = vmatmul.f32.gmra.mxu0 %v1567
    %v1589 = vpop.f32.mrf.mxu0
    %v1590 = vadd.f32 %v1565, %v1589
    %1591 = vmatmul.f32.gmra.mxu0 %v1570
    %v1592 = vpop.f32.mrf.mxu0
    %v1593 = vadd.f32 %v1565, %v1592
    %1594 = vdwg.mxu0
    %v1595 = vadd.f32 %v1590, %v961
    %v1596 = vadd.f32 %v1593, %v962
    %v1597 = vsel %vm63, %v1595, 0.0
    %1598 = vadd.xlane.f32.xlu0 %v1597
    %v1599 = vpop.xlane.xlu0 %1598
    %v1600 = vsel %vm63, %v1596, 0.0
    %1601 = vadd.xlane.f32.xlu0 %v1600
    %v1602 = vpop.xlane.xlu0 %1601
    %v1603 = vmul.f32 %v1599, %v705
    %v1604 = vmul.f32 %v1602, %v705
    %v1605 = vsub.f32 %v1595, %v1603
    %v1606 = vsub.f32 %v1596, %v1604
    %v1607 = vmul.f32 %v1605, %v1605
    %v1608 = vmul.f32 %v1606, %v1606
    %v1609 = vsel %vm63, %v1607, 0.0
    %1610 = vadd.xlane.f32.xlu0 %v1609
    %v1611 = vpop.xlane.xlu0 %1610
    %v1612 = vsel %vm63, %v1608, 0.0
    %1613 = vadd.xlane.f32.xlu0 %v1612
    %v1614 = vpop.xlane.xlu0 %1613
    %v1615 = vmul.f32 %v1611, %v705
    %v1616 = vmul.f32 %v1614, %v705
    %v1617 = vadd.f32 %v1615, 1e-12
    %v1618 = vadd.f32 %v1616, 1e-12
    %v1619 = vrsqrt.pop %v1617
    %v1620 = vmul.f32 %v1619, %v1617
    %v1621 = vmul.f32 %v1620, %v1619
    %v1622 = vmul.f32 0.5, %v1621
    %v1623 = vsub.f32 1.5, %v1622
    %v1624 = vmul.f32 %v1619, %v1623
    %vm1625 = vweird.f32 %v1617
    %vm1626 = vweird.f32 %v1619
    %vm1627 = vmor %vm1625, %vm1626
    %v1628 = vsel %vm1627, %v1619, %v1624
    %v1629 = vrsqrt.pop %v1618
    %v1630 = vmul.f32 %v1629, %v1618
    %v1631 = vmul.f32 %v1630, %v1629
    %v1632 = vmul.f32 0.5, %v1631
    %v1633 = vsub.f32 1.5, %v1632
    %v1634 = vmul.f32 %v1629, %v1633
    %vm1635 = vweird.f32 %v1618
    %vm1636 = vweird.f32 %v1629
    %vm1637 = vmor %vm1635, %vm1636
    %v1638 = vsel %vm1637, %v1629, %v1634
    %v1639 = vmul.f32 %v1605, %v1628
    %v1640 = vmul.f32 %v1606, %v1638
    %v1641 = vperm.slane %v964, 3
    %v1642 = vmul.f32 %v1639, %v1641
    %v1643 = vmul.f32 %v1640, %v1641
    %v1644 = vperm.slane %v964, 4
    %v1645 = vadd.f32 %v1642, %v1644
    %v1646 = vadd.f32 %v1643, %v1644
    %s1647 = scalar_lea.vmem %s3, 32
    %v1648 = vld [vmem:[%s1647] sm:$0xff]
    %v1649 = vld [vmem:[%s1647 + $0x8] sm:$0xff]
    %v1650 = vld [vmem:[%s1647 + $0x10] sm:$0xff]
    %v1651 = vld [vmem:[%s1647 + $0x18] sm:$0xff]
    %v1652 = vperm.slane %v964, 1
    %v1654 = vsel %vm63, %v1645, 0
    %v1657 = vsel %vm63, %v1646, 0
    %1659 = vmatpush.msra.mxu0 0.0
    %1660 = vmatpush.msra.mxu0 0.0
    %1661 = vmatpush.msra.mxu0 0.0
    %1662 = vmatpush.msra.mxu0 0.0
    %1663 = vmatpush.msra.mxu0 0.0
    %1664 = vmatpush.msra.mxu0 0.0
    %1665 = vmatpush.msra.mxu0 0.0
    %1666 = vmatpush.msra.mxu0 0.0
    %1667 = vmatpush.msra.mxu0 0.0
    %1668 = vmatpush.msra.mxu0 0.0
    %1669 = vmatpush.msra.mxu0 0.0
    %1670 = vmatpush.msra.mxu0 0.0
    %1671 = vmatpush.msra.mxu0 %v1651
    %1672 = vmatpush.msra.mxu0 %v1650
    %1673 = vmatpush.msra.mxu0 %v1649
    %1674 = vmatpush.msra.mxu0 %v1648
    %1675 = vmatmul.f32.gmra.mxu0 %v1654
    %v1676 = vpop.f32.mrf.mxu0
    %v1677 = vadd.f32 %v1652, %v1676
    %1678 = vmatmul.f32.gmra.mxu0 %v1657
    %v1679 = vpop.f32.mrf.mxu0
    %v1680 = vadd.f32 %v1652, %v1679
    %1681 = vdwg.mxu0
    %v1682 = vmul.f32 %v1677, 0.5
    %v1683 = vmul.f32 %v1680, 0.5
    %v1684 = vmul.f32 %v1677, 0.70710677
    %v1685 = vmul.f32 %v1680, 0.70710677
    %v1686 = vmul.f32 %v1684, %v1684
    %v1687 = vmin.f32 16.0, %v1686
    %v1688 = vmul.f32 %v1687, 2.1237322e-06
    %v1689 = vadd.f32 %v1688, 0.00028619796
    %v1690 = vmul.f32 %v1687, %v1689
    %v1691 = vadd.f32 %v1690, 0.0036580483
    %v1692 = vmul.f32 %v1687, %v1691
    %v1693 = vadd.f32 %v1692, 0.05243302
    %v1694 = vmul.f32 %v1687, %v1693
    %v1695 = vadd.f32 %v1694, 0.18741608
    %v1696 = vmul.f32 %v1687, %v1695
    %v1697 = vadd.f32 %v1696, 1.1283791
    %v1698 = vmul.f32 %v1684, %v1697
    %v1699 = vmul.f32 %v1687, 3.8918573e-05
    %v1700 = vadd.f32 %v1699, 0.001143296
    %v1701 = vmul.f32 %v1687, %v1700
    %v1702 = vadd.f32 %v1701, 0.014752088
    %v1703 = vmul.f32 %v1687, %v1702
    %v1704 = vadd.f32 %v1703, 0.112945676
    %v1705 = vmul.f32 %v1687, %v1704
    %v1706 = vadd.f32 %v1705, 0.4994258
    %v1707 = vmul.f32 %v1687, %v1706
    %v1708 = vadd.f32 %v1707, 1.0
    %v1709 = vrcp.pop %v1708
    %v1710 = vmul.f32 %v1708, %v1709
    %v1711 = vsub.f32 1.0, %v1710
    %v1712 = vmul.f32 %v1709, %v1711
    %v1713 = vadd.f32 %v1709, %v1712
    %vm1714 = vweird.f32 %v1708
    %vm1715 = vweird.f32 %v1709
    %vm1716 = vmor %vm1714, %vm1715
    %v1717 = vsel %vm1716, %v1709, %v1713
    %v1718 = vand.u32 2147483647, %v1708
    %vm1719 = vcmp.eq.f32.partialorder %v1718, 8.507059e+37
    %v1720 = vand.u32 %v1708, 2147483648
    %v1721 = vor.u32 1.1754944e-38, %v1720
    %v1722 = vsel %vm1719, %v1721, %v1717
    %v1723 = vmul.f32 %v1698, %v1722
    %v1724 = vmin.f32 %v1723, 1.0
    %v1725 = vmax.f32 %v1724, -1.0
    %v1726 = vmul.f32 %v1685, %v1685
    %v1727 = vmin.f32 16.0, %v1726
    %v1728 = vmul.f32 %v1727, 2.1237322e-06
    %v1729 = vadd.f32 %v1728, 0.00028619796
    %v1730 = vmul.f32 %v1727, %v1729
    %v1731 = vadd.f32 %v1730, 0.0036580483
    %v1732 = vmul.f32 %v1727, %v1731
    %v1733 = vadd.f32 %v1732, 0.05243302
    %v1734 = vmul.f32 %v1727, %v1733
    %v1735 = vadd.f32 %v1734, 0.18741608
    %v1736 = vmul.f32 %v1727, %v1735
    %v1737 = vadd.f32 %v1736, 1.1283791
    %v1738 = vmul.f32 %v1685, %v1737
    %v1739 = vmul.f32 %v1727, 3.8918573e-05
    %v1740 = vadd.f32 %v1739, 0.001143296
    %v1741 = vmul.f32 %v1727, %v1740
    %v1742 = vadd.f32 %v1741, 0.014752088
    %v1743 = vmul.f32 %v1727, %v1742
    %v1744 = vadd.f32 %v1743, 0.112945676
    %v1745 = vmul.f32 %v1727, %v1744
    %v1746 = vadd.f32 %v1745, 0.4994258
    %v1747 = vmul.f32 %v1727, %v1746
    %v1748 = vadd.f32 %v1747, 1.0
    %v1749 = vrcp.pop %v1748
    %v1750 = vmul.f32 %v1748, %v1749
    %v1751 = vsub.f32 1.0, %v1750
    %v1752 = vmul.f32 %v1749, %v1751
    %v1753 = vadd.f32 %v1749, %v1752
    %vm1754 = vweird.f32 %v1748
    %vm1755 = vweird.f32 %v1749
    %vm1756 = vmor %vm1754, %vm1755
    %v1757 = vsel %vm1756, %v1749, %v1753
    %v1758 = vand.u32 2147483647, %v1748
    %vm1759 = vcmp.eq.f32.partialorder %v1758, 8.507059e+37
    %v1760 = vand.u32 %v1748, 2147483648
    %v1761 = vor.u32 1.1754944e-38, %v1760
    %v1762 = vsel %vm1759, %v1761, %v1757
    %v1763 = vmul.f32 %v1738, %v1762
    %v1764 = vmin.f32 %v1763, 1.0
    %v1765 = vmax.f32 %v1764, -1.0
    %v1766 = vadd.f32 %v1725, 1.0
    %v1767 = vadd.f32 %v1765, 1.0
    %v1768 = vmul.f32 %v1682, %v1766
    %v1769 = vmul.f32 %v1683, %v1767
    %s1770 = scalar_lea.vmem %s4, 64
    %v1771 = vld [vmem:[%s1770] sm:$0xff]
    %v1772 = vld [vmem:[%s1770 + $0x8] sm:$0xff]
    %v1773 = vld [vmem:[%s1770 + $0x10] sm:$0xff]
    %v1774 = vld [vmem:[%s1770 + $0x18] sm:$0xff]
    %v1775 = vld [vmem:[%s1770 + $0x20] sm:$0xff]
    %v1776 = vld [vmem:[%s1770 + $0x28] sm:$0xff]
    %v1777 = vld [vmem:[%s1770 + $0x30] sm:$0xff]
    %v1778 = vld [vmem:[%s1770 + $0x38] sm:$0xff]
    %v1779 = vperm.slane %v964, 5
    %v1781 = vsel %vm881, %v1768, 0
    %v1784 = vsel %vm881, %v1769, 0
    %1786 = vmatpush.msra.mxu0 0.0
    %1787 = vmatpush.msra.mxu0 0.0
    %1788 = vmatpush.msra.mxu0 0.0
    %1789 = vmatpush.msra.mxu0 0.0
    %1790 = vmatpush.msra.mxu0 0.0
    %1791 = vmatpush.msra.mxu0 0.0
    %1792 = vmatpush.msra.mxu0 0.0
    %1793 = vmatpush.msra.mxu0 0.0
    %1794 = vmatpush.msra.mxu0 %v1778
    %1795 = vmatpush.msra.mxu0 %v1777
    %1796 = vmatpush.msra.mxu0 %v1776
    %1797 = vmatpush.msra.mxu0 %v1775
    %1798 = vmatpush.msra.mxu0 %v1774
    %1799 = vmatpush.msra.mxu0 %v1773
    %1800 = vmatpush.msra.mxu0 %v1772
    %1801 = vmatpush.msra.mxu0 %v1771
    %1802 = vmatmul.f32.gmra.mxu0 %v1781
    %v1803 = vpop.f32.mrf.mxu0
    %v1804 = vadd.f32 %v1779, %v1803
    %1805 = vmatmul.f32.gmra.mxu0 %v1784
    %v1806 = vpop.f32.mrf.mxu0
    %v1807 = vadd.f32 %v1779, %v1806
    %1808 = vdwg.mxu0
    %v1809 = vadd.f32 %v1804, %v1645
    %v1810 = vadd.f32 %v1807, %v1646
    %v1811 = vsel %vm63, %v1809, 0.0
    %1812 = vadd.xlane.f32.xlu0 %v1811
    %v1813 = vpop.xlane.xlu0 %1812
    %v1814 = vsel %vm63, %v1810, 0.0
    %1815 = vadd.xlane.f32.xlu0 %v1814
    %v1816 = vpop.xlane.xlu0 %1815
    %v1817 = vmul.f32 %v1813, %v705
    %v1818 = vmul.f32 %v1816, %v705
    %v1819 = vsub.f32 %v1809, %v1817
    %v1820 = vsub.f32 %v1810, %v1818
    %v1821 = vmul.f32 %v1819, %v1819
    %v1822 = vmul.f32 %v1820, %v1820
    %v1823 = vsel %vm63, %v1821, 0.0
    %1824 = vadd.xlane.f32.xlu0 %v1823
    %v1825 = vpop.xlane.xlu0 %1824
    %v1826 = vsel %vm63, %v1822, 0.0
    %1827 = vadd.xlane.f32.xlu0 %v1826
    %v1828 = vpop.xlane.xlu0 %1827
    %v1829 = vmul.f32 %v1825, %v705
    %v1830 = vmul.f32 %v1828, %v705
    %v1831 = vadd.f32 %v1829, 1e-12
    %v1832 = vadd.f32 %v1830, 1e-12
    %v1833 = vrsqrt.pop %v1831
    %v1834 = vmul.f32 %v1833, %v1831
    %v1835 = vmul.f32 %v1834, %v1833
    %v1836 = vmul.f32 0.5, %v1835
    %v1837 = vsub.f32 1.5, %v1836
    %v1838 = vmul.f32 %v1833, %v1837
    %vm1839 = vweird.f32 %v1831
    %vm1840 = vweird.f32 %v1833
    %vm1841 = vmor %vm1839, %vm1840
    %v1842 = vsel %vm1841, %v1833, %v1838
    %v1843 = vrsqrt.pop %v1832
    %v1844 = vmul.f32 %v1843, %v1832
    %v1845 = vmul.f32 %v1844, %v1843
    %v1846 = vmul.f32 0.5, %v1845
    %v1847 = vsub.f32 1.5, %v1846
    %v1848 = vmul.f32 %v1843, %v1847
    %vm1849 = vweird.f32 %v1832
    %vm1850 = vweird.f32 %v1843
    %vm1851 = vmor %vm1849, %vm1850
    %v1852 = vsel %vm1851, %v1843, %v1848
    %v1853 = vmul.f32 %v1819, %v1842
    %v1854 = vmul.f32 %v1820, %v1852
    %v1855 = vperm.slane %v964, 6
    %v1856 = vmul.f32 %v1853, %v1855
    %v1857 = vmul.f32 %v1854, %v1855
    %v1858 = vperm.slane %v964, 7
    %v1859 = vadd.f32 %v1856, %v1858
    %v1860 = vadd.f32 %v1857, %v1858
    %1861 = vst.msk [vmem:[%s6] sm:$0xff] %vm63, %v1859
    %1862 = vst.msk [vmem:[%s6 + $0x8] sm:$0xff] %vm63, %v1860
    // Predicated region
    $region34: #{bert_model.1} parent=1 // pred_check
      _
    $region35: #{bert_model.1} parent=1 // pred_check_branch
      %1864 = sbr.rel (0) target = $region37
    $region36: #{bert_model.1} parent=1 // pred_region
      _
    $region37: #{bert_model.1} parent=1 // pred_fallthru
      _
    // Predicated region
    $region38: #{bert_model.1} parent=1 // pred_check
      _
    $region39: #{bert_model.1} parent=1 // pred_check_branch
      %1866 = sbr.rel (0) target = $region41
    $region40: #{bert_model.1} parent=1 // pred_region
      _
    $region41: #{bert_model.1} parent=1 // pred_fallthru
      _
    %1867 = vsyncpa [#allocation4], 1
    %1868 = vsyncpa [#allocation6], 1

</llo_original>
